<compile_context>
chip_gen: v6e
topology: v6e:2x2x1
jax: 0.10.0
libtpu: 0.0.40
codegen_flags: <defaults>
</compile_context>

<pallas_src>
import functools

import jax
import jax.numpy as jnp
from jax.experimental import pallas as pl
from jax.experimental.pallas import tpu as pltpu

LANE = 128
_DEFAULT_TILE = 1024
_VMEM_LIMIT = 48 * 1024 * 1024   # below v7x physical (64 MiB), above all defaults


def _round_up(x, m):
    return ((x + m - 1) // m) * m


def _sage_layer_kernel(adj_ref, hsrc_ref, hdst_ref, ws_ref, wn_ref, b_ref, *rest,
                       apply_act, apply_norm, d_out_real, eps):
    if apply_norm:
        gamma_ref, beta_ref, o_ref, acc_ref, deg_ref = rest
    else:
        o_ref, acc_ref, deg_ref = rest

    k = pl.program_id(1)

    @pl.when(k == 0)
    def _():
        acc_ref[...] = jnp.zeros_like(acc_ref)
        deg_ref[...] = jnp.zeros_like(deg_ref)

    adj = adj_ref[...]                                   # (tm, tk) bf16, values in {0,1}
    # Partial neighbor sums on the MXU: A_blk @ h_blk, f32 accumulate.
    acc_ref[...] += jnp.dot(adj, hsrc_ref[...], preferred_element_type=jnp.float32)
    # Partial in-degrees from the same resident adj tile (VPU cast + XLU lane
    # reduce; hidden under the adjacency DMA when HBM-bound).
    deg_ref[...] += jnp.sum(adj.astype(jnp.float32), axis=1, keepdims=True)

    @pl.when(k == pl.num_programs(1) - 1)
    def _():
        # mean aggregation (deg clamped to >= 1; zero-degree rows stay 0, DGL style)
        neigh = acc_ref[...] * (1.0 / jnp.maximum(deg_ref[...], 1.0))
        h_dst = hdst_ref[...].astype(jnp.float32)
        # self + neighbor projections: two MXU matmuls, no concat copy in VMEM
        y = jnp.dot(h_dst, ws_ref[...], preferred_element_type=jnp.float32)
        y = y + jnp.dot(neigh, wn_ref[...], preferred_element_type=jnp.float32)
        y = y + b_ref[...]

        if apply_act:                                    # ReLU before norm (DGL order)
            y = jnp.maximum(y, 0.0)

        if apply_norm:
            d_pad = y.shape[-1]
            inv_n = 1.0 / float(d_out_real)
            if d_out_real == d_pad:
                mean = jnp.sum(y, axis=-1, keepdims=True) * inv_n
                diff = y - mean
            else:
                # LayerNorm statistics over the real features only (lanes >=
                # d_out_real are padding)
                lane_idx = jax.lax.broadcasted_iota(jnp.int32, y.shape, 1)
                mask = (lane_idx < d_out_real).astype(jnp.float32)
                mean = jnp.sum(y * mask, axis=-1, keepdims=True) * inv_n
                diff = (y - mean) * mask
            var = jnp.sum(diff * diff, axis=-1, keepdims=True) * inv_n
            y = (y - mean) * jax.lax.rsqrt(var + eps)
            # gamma/beta are zero on padded lanes -> padded lanes stay exactly 0
            y = y * gamma_ref[...] + beta_ref[...]

        o_ref[...] = y.astype(o_ref.dtype)


def sage_conv_layer(adj, h, w_self, w_neigh, bias, gamma, beta, *, apply_act,
                    apply_norm, d_out_real, out_dtype, eps=1e-5, tile=_DEFAULT_TILE):
    """One fused SAGEConv layer on padded/bf16 inputs.

    adj:     (Np, Np)      bf16 dense adjacency (zero-padded)
    h:       (Np, Dinp)    bf16 node features   (lane-padded to 128 multiple)
    w_self:  (Dinp, Doutp) f32 self-projection  (zero-padded)
    w_neigh: (Dinp, Doutp) f32 neighbor projection (zero-padded)
    """
    n_pad = adj.shape[0]
    d_in_p = h.shape[1]
    d_out_p = w_self.shape[1]
    tm = tk = min(tile, n_pad)
    grid = (n_pad // tm, n_pad // tk)

    kernel = functools.partial(_sage_layer_kernel, apply_act=apply_act,
                               apply_norm=apply_norm, d_out_real=d_out_real,
                               eps=eps)

    in_specs = [
        pl.BlockSpec((tm, tk), lambda i, k: (i, k)),            # adj tile
        pl.BlockSpec((tk, d_in_p), lambda i, k: (k, 0)),        # h as message source
        pl.BlockSpec((tm, d_in_p), lambda i, k: (i, 0)),        # h as destination (self)
        pl.BlockSpec((d_in_p, d_out_p), lambda i, k: (0, 0)),   # W_self
        pl.BlockSpec((d_in_p, d_out_p), lambda i, k: (0, 0)),   # W_neigh
        pl.BlockSpec((1, d_out_p), lambda i, k: (0, 0)),        # bias
    ]
    args = [adj, h, h, w_self, w_neigh, bias]
    if apply_norm:                                              # skip unused DMAs on last layer
        in_specs += [pl.BlockSpec((1, d_out_p), lambda i, k: (0, 0)),
                     pl.BlockSpec((1, d_out_p), lambda i, k: (0, 0))]
        args += [gamma, beta]

    grid_spec = pltpu.PrefetchScalarGridSpec(
        num_scalar_prefetch=0,
        grid=grid,
        in_specs=in_specs,
        out_specs=pl.BlockSpec((tm, d_out_p), lambda i, k: (i, 0)),
        scratch_shapes=[pltpu.VMEM((tm, d_in_p), jnp.float32),  # neighbor-sum accumulator
                        pltpu.VMEM((tm, 1), jnp.float32)],      # in-degree accumulator
    )

    return pl.pallas_call(
        kernel,
        out_shape=jax.ShapeDtypeStruct((n_pad, d_out_p), out_dtype),
        grid_spec=grid_spec,
        compiler_params=pltpu.CompilerParams(
            dimension_semantics=("parallel", "arbitrary"),
            vmem_limit_bytes=_VMEM_LIMIT),
    )(*args)


def init_sage_params(key, in_dim, num_hidden, out_dim, num_layers, lane=LANE):
    """Glorot-ish init; weights zero-padded to 128 lanes."""
    dims = [in_dim] + [num_hidden] * (num_layers - 1) + [out_dim]
    params = []
    for l in range(num_layers):
        d_in, d_out = dims[l], dims[l + 1]
        d_in_p, d_out_p = _round_up(d_in, lane), _round_up(d_out, lane)
        key, k1, k2 = jax.random.split(key, 3)
        scale = (6.0 / (d_in + d_out)) ** 0.5
        w_self = jax.random.uniform(k1, (d_in, d_out), jnp.float32, -scale, scale)
        w_neigh = jax.random.uniform(k2, (d_in, d_out), jnp.float32, -scale, scale)
        ws_p = jnp.zeros((d_in_p, d_out_p), jnp.float32).at[:d_in, :d_out].set(w_self)
        wn_p = jnp.zeros((d_in_p, d_out_p), jnp.float32).at[:d_in, :d_out].set(w_neigh)
        bias = jnp.zeros((1, d_out_p), jnp.float32)
        gamma = jnp.zeros((1, d_out_p), jnp.float32).at[:, :d_out].set(1.0)
        beta = jnp.zeros((1, d_out_p), jnp.float32)
        params.append(dict(w_self=ws_p, w_neigh=wn_p, bias=bias, gamma=gamma,
                           beta=beta, d_in=d_in, d_out=d_out,
                           d_in_p=d_in_p, d_out_p=d_out_p))
    return params


def sage_forward(adj, x, params, *, dropout_p=0.0, return_hidden=False,
                 tile=_DEFAULT_TILE):
    """Forward pass of SAGE (eval mode; encoding=False => ReLU every layer,
    LayerNorm on all but the last layer; head = Identity)."""
    # TODO(synk): training-mode dropout omitted (F.dropout with training=False is identity).
    n = adj.shape[0]
    # Pad node count so the adjacency's last dim is lane-dense (128-multiple) and
    # evenly divides into tiles.
    n_pad = _round_up(max(n, LANE), LANE) if n <= tile else _round_up(n, tile)

    # zero-padded bf16 adjacency (0/1 values are exact in bf16)
    adj_p = jnp.zeros((n_pad, n_pad), jnp.bfloat16).at[:n, :n].set(adj.astype(jnp.bfloat16))
    # zero-padded, lane-padded bf16 node features
    d_in_p0 = params[0]["d_in_p"]
    h = jnp.zeros((n_pad, d_in_p0), jnp.bfloat16).at[:n, :x.shape[1]].set(
        x.astype(jnp.bfloat16))

    num_layers = len(params)
    hidden_list = []
    for l, p in enumerate(params):
        is_last = (l == num_layers - 1)
        h = sage_conv_layer(
            adj_p, h, p["w_self"], p["w_neigh"], p["bias"], p["gamma"], p["beta"],
            apply_act=True, apply_norm=not is_last, d_out_real=p["d_out"],
            out_dtype=(jnp.float32 if is_last else jnp.bfloat16), tile=tile)
        hidden_list.append(h[:n, :p["d_out"]])

    out = h[:n, :params[-1]["d_out"]].astype(jnp.float32)     # self.head = nn.Identity()
    if return_hidden:
        return out, hidden_list
    return out


if __name__ == "__main__":
    N = 64          # nodes in the graph g
    IN_DIM = 16
    NUM_HIDDEN = 32
    OUT_DIM = 32    # == num_hidden (consistent with the module's layer wiring)
    NUM_LAYERS = 2

    key = jax.random.PRNGKey(0)
    k_adj, k_x, k_p = jax.random.split(key, 3)

    # deterministic random graph (dense adjacency)
    adj = jax.random.bernoulli(k_adj, p=0.2, shape=(N, N)).astype(jnp.float32)
    x = jax.random.normal(k_x, (N, IN_DIM), jnp.float32)

    params = init_sage_params(k_p, IN_DIM, NUM_HIDDEN, OUT_DIM, NUM_LAYERS)

    out = sage_forward(adj, x, params)
    out = jax.block_until_ready(out)
    assert out.shape == (N, OUT_DIM) and out.dtype == jnp.float32
    assert bool(jnp.all(jnp.isfinite(out)))
    print("KERNEL_OK")
</pallas_src>

<mosaic_0001>
module attributes {stable_mosaic.version = 11 : i64} {
  func.func @_sage_layer_kernel(%arg0: i32, %arg1: i32, %arg2: memref<128x128xbf16, #tpu.memory_space<vmem>>, %arg3: memref<128x128xbf16, #tpu.memory_space<vmem>>, %arg4: memref<128x128xbf16, #tpu.memory_space<vmem>>, %arg5: memref<128x128xf32, #tpu.memory_space<vmem>>, %arg6: memref<128x128xf32, #tpu.memory_space<vmem>>, %arg7: memref<1x128xf32, #tpu.memory_space<vmem>>, %arg8: memref<1x128xf32, #tpu.memory_space<vmem>>, %arg9: memref<1x128xf32, #tpu.memory_space<vmem>>, %arg10: memref<128x128xbf16, #tpu.memory_space<vmem>>, %arg11: memref<128x128xf32, #tpu.memory_space<vmem>>, %arg12: memref<128x1xf32, #tpu.memory_space<vmem>>) attributes {dimension_semantics = [#tpu.dimension_semantics<parallel>, #tpu.dimension_semantics<arbitrary>], iteration_bounds = array<i64: 1, 1>, scalar_prefetch = 0 : i64, scratch_operands = 2 : i64, tpu.core_type = #tpu.core_type<tc>, window_params = [{transform_indices = @transform_0, window_bounds = array<i64: 128, 128>}, {transform_indices = @transform_1, window_bounds = array<i64: 128, 128>}, {transform_indices = @transform_2, window_bounds = array<i64: 128, 128>}, {pipeline_mode = #tpu.pipeline_mode<synchronous>, transform_indices = @transform_3, window_bounds = array<i64: 128, 128>}, {pipeline_mode = #tpu.pipeline_mode<synchronous>, transform_indices = @transform_4, window_bounds = array<i64: 128, 128>}, {pipeline_mode = #tpu.pipeline_mode<synchronous>, transform_indices = @transform_5, window_bounds = array<i64: 1, 128>}, {pipeline_mode = #tpu.pipeline_mode<synchronous>, transform_indices = @transform_6, window_bounds = array<i64: 1, 128>}, {pipeline_mode = #tpu.pipeline_mode<synchronous>, transform_indices = @transform_7, window_bounds = array<i64: 1, 128>}, {transform_indices = @transform_8, window_bounds = array<i64: 128, 128>}]} {
    %c0_i32 = arith.constant 0 : i32
    %0 = arith.cmpi eq, %arg1, %c0_i32 : i32
    %1 = arith.extui %0 : i1 to i32
    %c0_i32_0 = arith.constant 0 : i32
    %2 = arith.cmpi ne, %1, %c0_i32_0 : i32
    scf.if %2 {
      %cst_15 = arith.constant 0.000000e+00 : f32
      %18 = vector.broadcast %cst_15 : f32 to vector<128x128xf32>
      %c0_16 = arith.constant 0 : index
      %c0_17 = arith.constant 0 : index
      %19 = vector.load %arg11[%c0_16, %c0_17] : memref<128x128xf32, #tpu.memory_space<vmem>>, vector<128x128xf32>
      tpu.vector_store %arg11[%c0_16, %c0_17], %18 {strides = array<i32>} : memref<128x128xf32, #tpu.memory_space<vmem>>, vector<128x128xf32>,
      %cst_18 = arith.constant 0.000000e+00 : f32
      %20 = vector.broadcast %cst_18 : f32 to vector<128x1xf32>
      %c0_19 = arith.constant 0 : index
      %c0_20 = arith.constant 0 : index
      %21 = vector.load %arg12[%c0_19, %c0_20] : memref<128x1xf32, #tpu.memory_space<vmem>>, vector<128x1xf32>
      tpu.vector_store %arg12[%c0_19, %c0_20], %20 {strides = array<i32>} : memref<128x1xf32, #tpu.memory_space<vmem>>, vector<128x1xf32>,
    } else {
    }
    %c0 = arith.constant 0 : index
    %c0_1 = arith.constant 0 : index
    %3 = vector.load %arg2[%c0, %c0_1] : memref<128x128xbf16, #tpu.memory_space<vmem>>, vector<128x128xbf16>
    %c0_2 = arith.constant 0 : index
    %c0_3 = arith.constant 0 : index
    %4 = vector.load %arg11[%c0_2, %c0_3] : memref<128x128xf32, #tpu.memory_space<vmem>>, vector<128x128xf32>
    %c0_4 = arith.constant 0 : index
    %c0_5 = arith.constant 0 : index
    %5 = vector.load %arg3[%c0_4, %c0_5] : memref<128x128xbf16, #tpu.memory_space<vmem>>, vector<128x128xbf16>
    %cst = arith.constant dense<0.000000e+00> : vector<128x128xf32>
    %6 = tpu.matmul %3, %5, %cst {dimension_numbers = #tpu.dot_dimension_numbers<[1], [0], [0], [1], [0, 0, 1, 1], [], []>} : vector<128x128xbf16>, vector<128x128xbf16>, vector<128x128xf32> -> vector<128x128xf32>
    %7 = arith.addf %4, %6 : vector<128x128xf32>
    %c0_6 = arith.constant 0 : index
    %c0_7 = arith.constant 0 : index
    %8 = vector.load %arg11[%c0_6, %c0_7] : memref<128x128xf32, #tpu.memory_space<vmem>>, vector<128x128xf32>
    tpu.vector_store %arg11[%c0_6, %c0_7], %7 {strides = array<i32>} : memref<128x128xf32, #tpu.memory_space<vmem>>, vector<128x128xf32>,
    %c0_8 = arith.constant 0 : index
    %c0_9 = arith.constant 0 : index
    %9 = vector.load %arg12[%c0_8, %c0_9] : memref<128x1xf32, #tpu.memory_space<vmem>>, vector<128x1xf32>
    %10 = arith.extf %3 : vector<128x128xbf16> to vector<128x128xf32>
    %cst_10 = arith.constant dense<0.000000e+00> : vector<128xf32>
    %11 = vector.multi_reduction <add>, %10, %cst_10 [1] : vector<128x128xf32> to vector<128xf32>
    %12 = vector.shape_cast %11 : vector<128xf32> to vector<128x1xf32>
    %13 = arith.addf %9, %12 : vector<128x1xf32>
    %c0_11 = arith.constant 0 : index
    %c0_12 = arith.constant 0 : index
    %14 = vector.load %arg12[%c0_11, %c0_12] : memref<128x1xf32, #tpu.memory_space<vmem>>, vector<128x1xf32>
    tpu.vector_store %arg12[%c0_11, %c0_12], %13 {strides = array<i32>} : memref<128x1xf32, #tpu.memory_space<vmem>>, vector<128x1xf32>,
    %c0_i32_13 = arith.constant 0 : i32
    %15 = arith.cmpi eq, %arg1, %c0_i32_13 : i32
    %16 = arith.extui %15 : i1 to i32
    %c0_i32_14 = arith.constant 0 : i32
    %17 = arith.cmpi ne, %16, %c0_i32_14 : i32
    scf.if %17 {
      %c0_15 = arith.constant 0 : index
      %c0_16 = arith.constant 0 : index
      %18 = vector.load %arg11[%c0_15, %c0_16] : memref<128x128xf32, #tpu.memory_space<vmem>>, vector<128x128xf32>
      %c0_17 = arith.constant 0 : index
      %c0_18 = arith.constant 0 : index
      %19 = vector.load %arg12[%c0_17, %c0_18] : memref<128x1xf32, #tpu.memory_space<vmem>>, vector<128x1xf32>
      %cst_19 = arith.constant 1.000000e+00 : f32
      %20 = vector.broadcast %cst_19 : f32 to vector<128x1xf32>
      %21 = arith.maximumf %19, %20 : vector<128x1xf32>
      %cst_20 = arith.constant 1.000000e+00 : f32
      %22 = vector.broadcast %cst_20 : f32 to vector<128x1xf32>
      %23 = arith.divf %22, %21 : vector<128x1xf32>
      %24 = vector.broadcast %23 : vector<128x1xf32> to vector<128x128xf32>
      %25 = arith.mulf %18, %24 : vector<128x128xf32>
      %c0_21 = arith.constant 0 : index
      %c0_22 = arith.constant 0 : index
      %26 = vector.load %arg4[%c0_21, %c0_22] : memref<128x128xbf16, #tpu.memory_space<vmem>>, vector<128x128xbf16>
      %27 = arith.extf %26 : vector<128x128xbf16> to vector<128x128xf32>
      %c0_23 = arith.constant 0 : index
      %c0_24 = arith.constant 0 : index
      %28 = vector.load %arg5[%c0_23, %c0_24] : memref<128x128xf32, #tpu.memory_space<vmem>>, vector<128x128xf32>
      %cst_25 = arith.constant dense<0.000000e+00> : vector<128x128xf32>
      %29 = tpu.matmul %27, %28, %cst_25 {dimension_numbers = #tpu.dot_dimension_numbers<[1], [0], [0], [1], [0, 0, 1, 1], [], []>} : vector<128x128xf32>, vector<128x128xf32>, vector<128x128xf32> -> vector<128x128xf32>
      %c0_26 = arith.constant 0 : index
      %c0_27 = arith.constant 0 : index
      %30 = vector.load %arg6[%c0_26, %c0_27] : memref<128x128xf32, #tpu.memory_space<vmem>>, vector<128x128xf32>
      %cst_28 = arith.constant dense<0.000000e+00> : vector<128x128xf32>
      %31 = tpu.matmul %25, %30, %cst_28 {dimension_numbers = #tpu.dot_dimension_numbers<[1], [0], [0], [1], [0, 0, 1, 1], [], []>} : vector<128x128xf32>, vector<128x128xf32>, vector<128x128xf32> -> vector<128x128xf32>
      %32 = arith.addf %29, %31 : vector<128x128xf32>
      %c0_29 = arith.constant 0 : index
      %c0_30 = arith.constant 0 : index
      %33 = vector.load %arg7[%c0_29, %c0_30] : memref<1x128xf32, #tpu.memory_space<vmem>>, vector<1x128xf32>
      %34 = vector.broadcast %33 : vector<1x128xf32> to vector<128x128xf32>
      %35 = arith.addf %32, %34 : vector<128x128xf32>
      %cst_31 = arith.constant 0.000000e+00 : f32
      %36 = vector.broadcast %cst_31 : f32 to vector<128x128xf32>
      %37 = arith.maximumf %35, %36 : vector<128x128xf32>
      %38 = tpu.iota {dimensions = array<i32: 1>} : vector<128x128xi32>
      %c32_i32 = arith.constant 32 : i32
      %39 = vector.broadcast %c32_i32 : i32 to vector<128x128xi32>
      %40 = arith.cmpi slt, %38, %39 : vector<128x128xi32>
      %41 = arith.extui %40 : vector<128x128xi1> to vector<128x128xi32>
      %42 = arith.sitofp %41 : vector<128x128xi32> to vector<128x128xf32>
      %43 = arith.mulf %37, %42 : vector<128x128xf32>
      %cst_32 = arith.constant dense<0.000000e+00> : vector<128xf32>
      %44 = vector.multi_reduction <add>, %43, %cst_32 [1] : vector<128x128xf32> to vector<128xf32>
      %45 = vector.shape_cast %44 : vector<128xf32> to vector<128x1xf32>
      %cst_33 = arith.constant 3.125000e-02 : f32
      %46 = vector.broadcast %cst_33 : f32 to vector<128x1xf32>
      %47 = arith.mulf %45, %46 : vector<128x1xf32>
      %48 = vector.broadcast %47 : vector<128x1xf32> to vector<128x128xf32>
      %49 = arith.subf %37, %48 : vector<128x128xf32>
      %50 = arith.mulf %49, %42 : vector<128x128xf32>
      %51 = arith.mulf %50, %50 : vector<128x128xf32>
      %cst_34 = arith.constant dense<0.000000e+00> : vector<128xf32>
      %52 = vector.multi_reduction <add>, %51, %cst_34 [1] : vector<128x128xf32> to vector<128xf32>
      %53 = vector.shape_cast %52 : vector<128xf32> to vector<128x1xf32>
      %cst_35 = arith.constant 3.125000e-02 : f32
      %54 = vector.broadcast %cst_35 : f32 to vector<128x1xf32>
      %55 = arith.mulf %53, %54 : vector<128x1xf32>
      %56 = vector.broadcast %47 : vector<128x1xf32> to vector<128x128xf32>
      %57 = arith.subf %37, %56 : vector<128x128xf32>
      %cst_36 = arith.constant 9.99999974E-6 : f32
      %58 = vector.broadcast %cst_36 : f32 to vector<128x1xf32>
      %59 = arith.addf %55, %58 : vector<128x1xf32>
      %60 = math.rsqrt %59 : vector<128x1xf32>
      %61 = vector.broadcast %60 : vector<128x1xf32> to vector<128x128xf32>
      %62 = arith.mulf %57, %61 : vector<128x128xf32>
      %c0_37 = arith.constant 0 : index
      %c0_38 = arith.constant 0 : index
      %63 = vector.load %arg8[%c0_37, %c0_38] : memref<1x128xf32, #tpu.memory_space<vmem>>, vector<1x128xf32>
      %64 = vector.broadcast %63 : vector<1x128xf32> to vector<128x128xf32>
      %65 = arith.mulf %62, %64 : vector<128x128xf32>
      %c0_39 = arith.constant 0 : index
      %c0_40 = arith.constant 0 : index
      %66 = vector.load %arg9[%c0_39, %c0_40] : memref<1x128xf32, #tpu.memory_space<vmem>>, vector<1x128xf32>
      %67 = vector.broadcast %66 : vector<1x128xf32> to vector<128x128xf32>
      %68 = arith.addf %65, %67 : vector<128x128xf32>
      %69 = arith.truncf %68 : vector<128x128xf32> to vector<128x128xbf16>
      %c0_41 = arith.constant 0 : index
      %c0_42 = arith.constant 0 : index
      %70 = vector.load %arg10[%c0_41, %c0_42] : memref<128x128xbf16, #tpu.memory_space<vmem>>, vector<128x128xbf16>
      tpu.vector_store %arg10[%c0_41, %c0_42], %69 {strides = array<i32>} : memref<128x128xbf16, #tpu.memory_space<vmem>>, vector<128x128xbf16>,
    } else {
    }
    return
  }
  func.func @transform_0(%arg0: i32, %arg1: i32) -> (i32, i32) {
    %c0_i32 = arith.constant 0 : i32
    return %arg0, %arg1 : i32, i32
  }
  func.func @transform_1(%arg0: i32, %arg1: i32) -> (i32, i32) {
    %c0_i32 = arith.constant 0 : i32
    %c0_i32_0 = arith.constant 0 : i32
    return %arg1, %c0_i32 : i32, i32
  }
  func.func @transform_2(%arg0: i32, %arg1: i32) -> (i32, i32) {
    %c0_i32 = arith.constant 0 : i32
    %c0_i32_0 = arith.constant 0 : i32
    return %arg0, %c0_i32 : i32, i32
  }
  func.func @transform_3(%arg0: i32, %arg1: i32) -> (i32, i32) {
    %c0_i32 = arith.constant 0 : i32
    %c0_i32_0 = arith.constant 0 : i32
    %c0_i32_1 = arith.constant 0 : i32
    return %c0_i32, %c0_i32_0 : i32, i32
  }
  func.func @transform_4(%arg0: i32, %arg1: i32) -> (i32, i32) {
    %c0_i32 = arith.constant 0 : i32
    %c0_i32_0 = arith.constant 0 : i32
    %c0_i32_1 = arith.constant 0 : i32
    return %c0_i32, %c0_i32_0 : i32, i32
  }
  func.func @transform_5(%arg0: i32, %arg1: i32) -> (i32, i32) {
    %c0_i32 = arith.constant 0 : i32
    %c0_i32_0 = arith.constant 0 : i32
    %c0_i32_1 = arith.constant 0 : i32
    return %c0_i32, %c0_i32_0 : i32, i32
  }
  func.func @transform_6(%arg0: i32, %arg1: i32) -> (i32, i32) {
    %c0_i32 = arith.constant 0 : i32
    %c0_i32_0 = arith.constant 0 : i32
    %c0_i32_1 = arith.constant 0 : i32
    return %c0_i32, %c0_i32_0 : i32, i32
  }
  func.func @transform_7(%arg0: i32, %arg1: i32) -> (i32, i32) {
    %c0_i32 = arith.constant 0 : i32
    %c0_i32_0 = arith.constant 0 : i32
    %c0_i32_1 = arith.constant 0 : i32
    return %c0_i32, %c0_i32_0 : i32, i32
  }
  func.func @transform_8(%arg0: i32, %arg1: i32) -> (i32, i32) {
    %c0_i32 = arith.constant 0 : i32
    %c0_i32_0 = arith.constant 0 : i32
    return %arg0, %c0_i32 : i32, i32
  }
}

</mosaic_0001>

<llo_original>
// kernel: tpu_custom_call.1
$region0: #{tpu_custom_call.1}
  #allocation0 [shape = 'u32[]', space=smem, size = 0x4, offset = 0x4, fixed_abs, tag = 'smem constant byte address 0x4 - core index']
  #allocation1 [shape = 'u32[144,128]{1,0:T(1,128)}', space=vmem, size = 0x12000, scoped, tag = 'internal scratch']
  #allocation2 [shape = 'f32[128,128]{1,0:T(8,128)}', space=vmem, size = 0x10000, scoped, tag = 'scratch operand']
  #allocation3 [shape = 'f32[128,1]{1,0:T(8,128)}', space=vmem, size = 0x10000, scoped, tag = 'scratch operand']
  %s0 = inlined_call_operand.hbm [shape: bf16[128,128], index: 0, kind: input, shape index: {}]
  %s1 = inlined_call_operand.hbm [shape: bf16[128,128], index: 1, kind: input, shape index: {}]
  %s2 = inlined_call_operand.hbm [shape: bf16[128,128], index: 2, kind: input, shape index: {}]
  %s3 = inlined_call_operand.hbm [shape: f32[128,128], index: 3, kind: input, shape index: {}]
  %s4 = inlined_call_operand.hbm [shape: f32[128,128], index: 4, kind: input, shape index: {}]
  %s5 = inlined_call_operand.vmem [shape: f32[1,128], index: 5, kind: input, shape index: {}]
  %s6 = inlined_call_operand.vmem [shape: f32[1,128], index: 6, kind: input, shape index: {}]
  %s7 = inlined_call_operand.vmem [shape: f32[1,128], index: 7, kind: input, shape index: {}]
  %s8 = inlined_call_operand.hbm [shape: bf16[128,128], index: 8, kind: output, shape index: {}]
  %s9 = sld [smem:[#allocation0]]
  $region70: #{tpu_custom_call.1} parent=0
    _
  %s11 = ssub.s32 1, %s9
  %s12 = scalar_select 0, %s11, %s9
  $region1: #{tpu_custom_call.1} parent=0
    #allocation4 [shape = 'u8[32768]{0}', space=vmem, size = 0x8000, scoped, tag = 'input window, operand 0, single buffered']
    #allocation5 [shape = 's32[1]{0}', space=sflag, size = 0x4, scoped, tag = 'scoped memory for tpu_custom_call.1']
    #allocation6 [shape = 's32[1]{0}', space=sflag, size = 0x4, scoped, tag = 'scoped memory for tpu_custom_call.1']
    #allocation7 [shape = 'u8[32768]{0}', space=vmem, size = 0x8000, scoped, tag = 'input window, operand 1, single buffered']
    #allocation8 [shape = 's32[1]{0}', space=sflag, size = 0x4, scoped, tag = 'scoped memory for tpu_custom_call.1']
    #allocation9 [shape = 'u8[32768]{0}', space=vmem, size = 0x8000, scoped, tag = 'input window, operand 2, single buffered']
    #allocation10 [shape = 'u8[65536]{0}', space=vmem, size = 0x10000, scoped, tag = 'input window, operand 3, single buffered']
    #allocation11 [shape = 's32[1]{0}', space=sflag, size = 0x4, scoped, tag = 'scoped memory for tpu_custom_call.1']
    #allocation12 [shape = 'u8[65536]{0}', space=vmem, size = 0x10000, scoped, tag = 'input window, operand 4, single buffered']
    #allocation13 [shape = 'u8[32768]{0}', space=vmem, size = 0x8000, scoped, tag = 'output window, operand 0, single buffered']
    %13 = vsyncpa [#allocation5], 0
    %14 = vsyncpa [#allocation8], 0
    %15 = vsyncpa [#allocation11], 0
    %16 = vsyncpa [#allocation6], 0
    // Predicated region
    $region2: #{tpu_custom_call.1} parent=1 // pred_check
      _
    $region3: #{tpu_custom_call.1} parent=1 // pred_check_branch
      %18 = sbr.rel (0) target = $region5
    $region4: #{tpu_custom_call.1} parent=1 // pred_region
      %s20 = ssub.s32 1024, 1024
      %21 = vsyncadd [#allocation5], %s20
      %s22 = sshll.u32 [#allocation4], 4
      %s23 = int_to_ptr.vmem [resolvable:$true] %s22
      %28 = dma.hbm_to_vmem [thread:$0]  %s0, 1024, %s23, [#allocation5], 64, 64, 4
    $region5: #{tpu_custom_call.1} parent=1 // pred_fallthru
      _
    // Predicated region
    $region6: #{tpu_custom_call.1} parent=1 // pred_check
      _
    $region7: #{tpu_custom_call.1} parent=1 // pred_check_branch
      %30 = sbr.rel (0) target = $region9
    $region8: #{tpu_custom_call.1} parent=1 // pred_region
      %s32 = ssub.s32 1024, 1024
      %33 = vsyncadd [#allocation8], %s32
      %s34 = sshll.u32 [#allocation7], 4
      %s35 = int_to_ptr.vmem [resolvable:$true] %s34
      %40 = dma.hbm_to_vmem [thread:$0]  %s1, 1024, %s35, [#allocation8], 64, 64, 4
    $region9: #{tpu_custom_call.1} parent=1 // pred_fallthru
      _
    // Predicated region
    $region10: #{tpu_custom_call.1} parent=1 // pred_check
      _
    $region11: #{tpu_custom_call.1} parent=1 // pred_check_branch
      %42 = sbr.rel (0) target = $region13
    $region12: #{tpu_custom_call.1} parent=1 // pred_region
      %s44 = ssub.s32 1024, 1024
      %45 = vsyncadd [#allocation8], %s44
      %s46 = sshll.u32 [#allocation9], 4
      %s47 = int_to_ptr.vmem [resolvable:$true] %s46
      %52 = dma.hbm_to_vmem [thread:$0]  %s2, 1024, %s47, [#allocation8], 64, 64, 4
    $region13: #{tpu_custom_call.1} parent=1 // pred_fallthru
      _
    // Predicated region
    $region14: #{tpu_custom_call.1} parent=1 // pred_check
      _
    $region15: #{tpu_custom_call.1} parent=1 // pred_check_branch
      %54 = sbr.rel (0) target = $region17
    $region16: #{tpu_custom_call.1} parent=1 // pred_region
      %s56 = ssub.s32 2048, 2048
      %57 = vsyncadd [#allocation11], %s56
      %s58 = sshll.u32 [#allocation10], 4
      %s59 = int_to_ptr.vmem [resolvable:$true] %s58
      %64 = dma.hbm_to_vmem [thread:$0]  %s3, 2048, %s59, [#allocation11], 128, 128, 8
    $region17: #{tpu_custom_call.1} parent=1 // pred_fallthru
      _
    // Predicated region
    $region18: #{tpu_custom_call.1} parent=1 // pred_check
      _
    $region19: #{tpu_custom_call.1} parent=1 // pred_check_branch
      %66 = sbr.rel (0) target = $region21
    $region20: #{tpu_custom_call.1} parent=1 // pred_region
      %s68 = ssub.s32 2048, 2048
      %69 = vsyncadd [#allocation11], %s68
      %s70 = sshll.u32 [#allocation12], 4
      %s71 = int_to_ptr.vmem [resolvable:$true] %s70
      %76 = dma.hbm_to_vmem [thread:$0]  %s4, 2048, %s71, [#allocation11], 128, 128, 8
    $region21: #{tpu_custom_call.1} parent=1 // pred_fallthru
      _
    // Predicated region
    $region22: #{tpu_custom_call.1} parent=1 // pred_check
      _
    $region23: #{tpu_custom_call.1} parent=1 // pred_check_branch
      %78 = sbr.rel (0) target = $region25
    $region24: #{tpu_custom_call.1} parent=1 // pred_region
      _
    $region25: #{tpu_custom_call.1} parent=1 // pred_fallthru
      _
    // Predicated region
    $region26: #{tpu_custom_call.1} parent=1 // pred_check
      _
    $region27: #{tpu_custom_call.1} parent=1 // pred_check_branch
      %80 = sbr.rel (0) target = $region29
    $region28: #{tpu_custom_call.1} parent=1 // pred_region
      _
    $region29: #{tpu_custom_call.1} parent=1 // pred_fallthru
      _
    // Predicated region
    $region30: #{tpu_custom_call.1} parent=1 // pred_check
      _
    $region31: #{tpu_custom_call.1} parent=1 // pred_check_branch
      %82 = sbr.rel (0) target = $region33
    $region32: #{tpu_custom_call.1} parent=1 // pred_region
      _
    $region33: #{tpu_custom_call.1} parent=1 // pred_fallthru
      _
    // Predicated region
    $region34: #{tpu_custom_call.1} parent=1 // pred_check
      _
    $region35: #{tpu_custom_call.1} parent=1 // pred_check_branch
      %84 = sbr.rel (0) target = $region37
    $region36: #{tpu_custom_call.1} parent=1 // pred_region
      %85 = dma.done [#allocation5], 1024
    $region37: #{tpu_custom_call.1} parent=1 // pred_fallthru
      _
    // Predicated region
    $region38: #{tpu_custom_call.1} parent=1 // pred_check
      _
    $region39: #{tpu_custom_call.1} parent=1 // pred_check_branch
      %87 = sbr.rel (0) target = $region41
    $region40: #{tpu_custom_call.1} parent=1 // pred_region
      %88 = dma.done [#allocation8], 1024
    $region41: #{tpu_custom_call.1} parent=1 // pred_fallthru
      _
    // Predicated region
    $region42: #{tpu_custom_call.1} parent=1 // pred_check
      _
    $region43: #{tpu_custom_call.1} parent=1 // pred_check_branch
      %90 = sbr.rel (0) target = $region45
    $region44: #{tpu_custom_call.1} parent=1 // pred_region
      %91 = dma.done [#allocation8], 1024
    $region45: #{tpu_custom_call.1} parent=1 // pred_fallthru
      _
    // Predicated region
    $region46: #{tpu_custom_call.1} parent=1 // pred_check
      _
    $region47: #{tpu_custom_call.1} parent=1 // pred_check_branch
      %93 = sbr.rel (0) target = $region49
    $region48: #{tpu_custom_call.1} parent=1 // pred_region
      %94 = dma.done [#allocation11], 2048
    $region49: #{tpu_custom_call.1} parent=1 // pred_fallthru
      _
    // Predicated region
    $region50: #{tpu_custom_call.1} parent=1 // pred_check
      _
    $region51: #{tpu_custom_call.1} parent=1 // pred_check_branch
      %96 = sbr.rel (0) target = $region53
    $region52: #{tpu_custom_call.1} parent=1 // pred_region
      %97 = dma.done [#allocation11], 2048
    $region53: #{tpu_custom_call.1} parent=1 // pred_fallthru
      _
    %p99 = scmp.eq.s32.totalorder 0, 0
    // Predicated region
    $region54: #{tpu_custom_call.1} parent=1 // pred_check
      %p100 = pneg %p99
    $region55: #{tpu_custom_call.1} parent=1 // pred_check_branch
      %102 = sbr.rel (%p100) target = $region57
    $region56: #{tpu_custom_call.1} parent=1 // pred_region
      %103 = vst [vmem:[#allocation2] sm:$0xff] 0.0
      %104 = vst [vmem:[#allocation2 + $0x8] sm:$0xff] 0.0
      %105 = vst [vmem:[#allocation2 + $0x10] sm:$0xff] 0.0
      %106 = vst [vmem:[#allocation2 + $0x18] sm:$0xff] 0.0
      %107 = vst [vmem:[#allocation2 + $0x20] sm:$0xff] 0.0
      %108 = vst [vmem:[#allocation2 + $0x28] sm:$0xff] 0.0
      %109 = vst [vmem:[#allocation2 + $0x30] sm:$0xff] 0.0
      %110 = vst [vmem:[#allocation2 + $0x38] sm:$0xff] 0.0
      %111 = vst [vmem:[#allocation2 + $0x40] sm:$0xff] 0.0
      %112 = vst [vmem:[#allocation2 + $0x48] sm:$0xff] 0.0
      %113 = vst [vmem:[#allocation2 + $0x50] sm:$0xff] 0.0
      %114 = vst [vmem:[#allocation2 + $0x58] sm:$0xff] 0.0
      %115 = vst [vmem:[#allocation2 + $0x60] sm:$0xff] 0.0
      %116 = vst [vmem:[#allocation2 + $0x68] sm:$0xff] 0.0
      %117 = vst [vmem:[#allocation2 + $0x70] sm:$0xff] 0.0
      %118 = vst [vmem:[#allocation2 + $0x78] sm:$0xff] 0.0
      %vm119 = vcmask 7168
      %120 = vst.msk [vmem:[#allocation3] sm:$0xff] %vm119, 0.0
      %121 = vst.msk [vmem:[#allocation3 + $0x8] sm:$0xff] %vm119, 0.0
      %122 = vst.msk [vmem:[#allocation3 + $0x10] sm:$0xff] %vm119, 0.0
      %123 = vst.msk [vmem:[#allocation3 + $0x18] sm:$0xff] %vm119, 0.0
      %124 = vst.msk [vmem:[#allocation3 + $0x20] sm:$0xff] %vm119, 0.0
      %125 = vst.msk [vmem:[#allocation3 + $0x28] sm:$0xff] %vm119, 0.0
      %126 = vst.msk [vmem:[#allocation3 + $0x30] sm:$0xff] %vm119, 0.0
      %127 = vst.msk [vmem:[#allocation3 + $0x38] sm:$0xff] %vm119, 0.0
      %128 = vst.msk [vmem:[#allocation3 + $0x40] sm:$0xff] %vm119, 0.0
      %129 = vst.msk [vmem:[#allocation3 + $0x48] sm:$0xff] %vm119, 0.0
      %130 = vst.msk [vmem:[#allocation3 + $0x50] sm:$0xff] %vm119, 0.0
      %131 = vst.msk [vmem:[#allocation3 + $0x58] sm:$0xff] %vm119, 0.0
      %132 = vst.msk [vmem:[#allocation3 + $0x60] sm:$0xff] %vm119, 0.0
      %133 = vst.msk [vmem:[#allocation3 + $0x68] sm:$0xff] %vm119, 0.0
      %134 = vst.msk [vmem:[#allocation3 + $0x70] sm:$0xff] %vm119, 0.0
      %135 = vst.msk [vmem:[#allocation3 + $0x78] sm:$0xff] %vm119, 0.0
    $region57: #{tpu_custom_call.1} parent=1 // pred_fallthru
      _
    %v136 = vld [vmem:[#allocation4] sm:$0xf]
    %v137 = vld [vmem:[#allocation4 + $0x4] sm:$0xf]
    %v138 = vld [vmem:[#allocation4 + $0x8] sm:$0xf]
    %v139 = vld [vmem:[#allocation4 + $0xc] sm:$0xf]
    %v140 = vld [vmem:[#allocation4 + $0x10] sm:$0xf]
    %v141 = vld [vmem:[#allocation4 + $0x14] sm:$0xf]
    %v142 = vld [vmem:[#allocation4 + $0x18] sm:$0xf]
    %v143 = vld [vmem:[#allocation4 + $0x1c] sm:$0xf]
    %v144 = vld [vmem:[#allocation4 + $0x20] sm:$0xf]
    %v145 = vld [vmem:[#allocation4 + $0x24] sm:$0xf]
    %v146 = vld [vmem:[#allocation4 + $0x28] sm:$0xf]
    %v147 = vld [vmem:[#allocation4 + $0x2c] sm:$0xf]
    %v148 = vld [vmem:[#allocation4 + $0x30] sm:$0xf]
    %v149 = vld [vmem:[#allocation4 + $0x34] sm:$0xf]
    %v150 = vld [vmem:[#allocation4 + $0x38] sm:$0xf]
    %v151 = vld [vmem:[#allocation4 + $0x3c] sm:$0xf]
    %v152 = vld [vmem:[#allocation2] sm:$0xff]
    %v153 = vld [vmem:[#allocation2 + $0x8] sm:$0xff]
    %v154 = vld [vmem:[#allocation2 + $0x10] sm:$0xff]
    %v155 = vld [vmem:[#allocation2 + $0x18] sm:$0xff]
    %v156 = vld [vmem:[#allocation2 + $0x20] sm:$0xff]
    %v157 = vld [vmem:[#allocation2 + $0x28] sm:$0xff]
    %v158 = vld [vmem:[#allocation2 + $0x30] sm:$0xff]
    %v159 = vld [vmem:[#allocation2 + $0x38] sm:$0xff]
    %v160 = vld [vmem:[#allocation2 + $0x40] sm:$0xff]
    %v161 = vld [vmem:[#allocation2 + $0x48] sm:$0xff]
    %v162 = vld [vmem:[#allocation2 + $0x50] sm:$0xff]
    %v163 = vld [vmem:[#allocation2 + $0x58] sm:$0xff]
    %v164 = vld [vmem:[#allocation2 + $0x60] sm:$0xff]
    %v165 = vld [vmem:[#allocation2 + $0x68] sm:$0xff]
    %v166 = vld [vmem:[#allocation2 + $0x70] sm:$0xff]
    %v167 = vld [vmem:[#allocation2 + $0x78] sm:$0xff]
    %v168 = vld [vmem:[#allocation7] sm:$0xf]
    %v169 = vld [vmem:[#allocation7 + $0x4] sm:$0xf]
    %v170 = vld [vmem:[#allocation7 + $0x8] sm:$0xf]
    %v171 = vld [vmem:[#allocation7 + $0xc] sm:$0xf]
    %v172 = vld [vmem:[#allocation7 + $0x10] sm:$0xf]
    %v173 = vld [vmem:[#allocation7 + $0x14] sm:$0xf]
    %v174 = vld [vmem:[#allocation7 + $0x18] sm:$0xf]
    %v175 = vld [vmem:[#allocation7 + $0x1c] sm:$0xf]
    %v176 = vld [vmem:[#allocation7 + $0x20] sm:$0xf]
    %v177 = vld [vmem:[#allocation7 + $0x24] sm:$0xf]
    %v178 = vld [vmem:[#allocation7 + $0x28] sm:$0xf]
    %v179 = vld [vmem:[#allocation7 + $0x2c] sm:$0xf]
    %v180 = vld [vmem:[#allocation7 + $0x30] sm:$0xf]
    %v181 = vld [vmem:[#allocation7 + $0x34] sm:$0xf]
    %v182 = vld [vmem:[#allocation7 + $0x38] sm:$0xf]
    %v183 = vld [vmem:[#allocation7 + $0x3c] sm:$0xf]
    %v200 = vunpack.c.l.b16 %v136
    %v201 = vunpack.c.l.b16 %v137
    %v202 = vunpack.c.l.b16 %v138
    %v203 = vunpack.c.l.b16 %v139
    %v204 = vunpack.c.l.b16 %v140
    %v205 = vunpack.c.l.b16 %v141
    %v206 = vunpack.c.l.b16 %v142
    %v207 = vunpack.c.l.b16 %v143
    %v208 = vunpack.c.l.b16 %v144
    %v209 = vunpack.c.l.b16 %v145
    %v210 = vunpack.c.l.b16 %v146
    %v211 = vunpack.c.l.b16 %v147
    %v212 = vunpack.c.l.b16 %v148
    %v213 = vunpack.c.l.b16 %v149
    %v214 = vunpack.c.l.b16 %v150
    %v215 = vunpack.c.l.b16 %v151
    %v216 = vpack.c.b16 %v201, %v200
    %v217 = vpack.c.b16 %v203, %v202
    %v218 = vpack.c.b16 %v205, %v204
    %v219 = vpack.c.b16 %v207, %v206
    %v220 = vpack.c.b16 %v209, %v208
    %v221 = vpack.c.b16 %v211, %v210
    %v222 = vpack.c.b16 %v213, %v212
    %v223 = vpack.c.b16 %v215, %v214
    %v248 = vunpack.c.l.b16 %v168
    %v249 = vunpack.c.l.b16 %v169
    %v250 = vunpack.c.l.b16 %v170
    %v251 = vunpack.c.l.b16 %v171
    %v252 = vunpack.c.l.b16 %v172
    %v253 = vunpack.c.l.b16 %v173
    %v254 = vunpack.c.l.b16 %v174
    %v255 = vunpack.c.l.b16 %v175
    %v256 = vunpack.c.l.b16 %v176
    %v257 = vunpack.c.l.b16 %v177
    %v258 = vunpack.c.l.b16 %v178
    %v259 = vunpack.c.l.b16 %v179
    %v260 = vunpack.c.l.b16 %v180
    %v261 = vunpack.c.l.b16 %v181
    %v262 = vunpack.c.l.b16 %v182
    %v263 = vunpack.c.l.b16 %v183
    %v264 = vpack.c.b16 %v249, %v248
    %v265 = vpack.c.b16 %v251, %v250
    %v266 = vpack.c.b16 %v253, %v252
    %v267 = vpack.c.b16 %v255, %v254
    %v268 = vpack.c.b16 %v257, %v256
    %v269 = vpack.c.b16 %v259, %v258
    %v270 = vpack.c.b16 %v261, %v260
    %v271 = vpack.c.b16 %v263, %v262
    %280 = vmatprep.subr.bf16.mxu0 0
    %281 = vmatpush1.bf16.msra.mxu0 %v271
    %282 = vmatprep.subr.bf16.mxu0 0
    %283 = vmatpush1.bf16.msra.mxu0 %v270
    %284 = vmatprep.subr.bf16.mxu0 0
    %285 = vmatpush1.bf16.msra.mxu0 %v269
    %286 = vmatprep.subr.bf16.mxu0 0
    %287 = vmatpush1.bf16.msra.mxu0 %v268
    %288 = vmatprep.subr.bf16.mxu0 0
    %289 = vmatpush1.bf16.msra.mxu0 %v267
    %290 = vmatprep.subr.bf16.mxu0 0
    %291 = vmatpush1.bf16.msra.mxu0 %v266
    %292 = vmatprep.subr.bf16.mxu0 0
    %293 = vmatpush1.bf16.msra.mxu0 %v265
    %294 = vmatprep.subr.bf16.mxu0 0
    %295 = vmatpush1.bf16.msra.mxu0 %v264
    %296 = vmatprep.subr.bf16.mxu0 0
    %297 = vmatpush2.bf16.msra.mxu0 0
    %298 = vmatprep.subr.bf16.mxu0 0
    %299 = vmatpush2.bf16.msra.mxu0 0
    %300 = vmatprep.subr.bf16.mxu0 0
    %301 = vmatpush2.bf16.msra.mxu0 0
    %302 = vmatprep.subr.bf16.mxu0 0
    %303 = vmatpush2.bf16.msra.mxu0 0
    %304 = vmatprep.subr.bf16.mxu0 0
    %305 = vmatpush2.bf16.msra.mxu0 0
    %306 = vmatprep.subr.bf16.mxu0 0
    %307 = vmatpush2.bf16.msra.mxu0 0
    %308 = vmatprep.subr.bf16.mxu0 0
    %309 = vmatpush2.bf16.msra.mxu0 0
    %310 = vmatprep.subr.bf16.mxu0 0
    %311 = vmatpush2.bf16.msra.mxu0 0
    %312 = vmatprep.mubr.bf16.mxu0 0
    %313 = vmatmul.mubr.bf16.gmra.mxu0 %v216
    %v314 = vpop.f32.mrf.mxu0
    %v315 = vadd.f32 0.0, %v314
    %v316 = vpop.f32.mrf.mxu0
    %v317 = vpop.f32.mrf.mxu0
    %v318 = vadd.f32 0.0, %v317
    %v319 = vpop.f32.mrf.mxu0
    %320 = vmatprep.mubr.bf16.mxu0 0
    %321 = vmatmul.mubr.bf16.gmra.mxu0 %v217
    %v322 = vpop.f32.mrf.mxu0
    %v323 = vadd.f32 0.0, %v322
    %v324 = vpop.f32.mrf.mxu0
    %v325 = vpop.f32.mrf.mxu0
    %v326 = vadd.f32 0.0, %v325
    %v327 = vpop.f32.mrf.mxu0
    %328 = vmatprep.mubr.bf16.mxu0 0
    %329 = vmatmul.mubr.bf16.gmra.mxu0 %v218
    %v330 = vpop.f32.mrf.mxu0
    %v331 = vadd.f32 0.0, %v330
    %v332 = vpop.f32.mrf.mxu0
    %v333 = vpop.f32.mrf.mxu0
    %v334 = vadd.f32 0.0, %v333
    %v335 = vpop.f32.mrf.mxu0
    %336 = vmatprep.mubr.bf16.mxu0 0
    %337 = vmatmul.mubr.bf16.gmra.mxu0 %v219
    %v338 = vpop.f32.mrf.mxu0
    %v339 = vadd.f32 0.0, %v338
    %v340 = vpop.f32.mrf.mxu0
    %v341 = vpop.f32.mrf.mxu0
    %v342 = vadd.f32 0.0, %v341
    %v343 = vpop.f32.mrf.mxu0
    %344 = vmatprep.mubr.bf16.mxu0 0
    %345 = vmatmul.mubr.bf16.gmra.mxu0 %v220
    %v346 = vpop.f32.mrf.mxu0
    %v347 = vadd.f32 0.0, %v346
    %v348 = vpop.f32.mrf.mxu0
    %v349 = vpop.f32.mrf.mxu0
    %v350 = vadd.f32 0.0, %v349
    %v351 = vpop.f32.mrf.mxu0
    %352 = vmatprep.mubr.bf16.mxu0 0
    %353 = vmatmul.mubr.bf16.gmra.mxu0 %v221
    %v354 = vpop.f32.mrf.mxu0
    %v355 = vadd.f32 0.0, %v354
    %v356 = vpop.f32.mrf.mxu0
    %v357 = vpop.f32.mrf.mxu0
    %v358 = vadd.f32 0.0, %v357
    %v359 = vpop.f32.mrf.mxu0
    %360 = vmatprep.mubr.bf16.mxu0 0
    %361 = vmatmul.mubr.bf16.gmra.mxu0 %v222
    %v362 = vpop.f32.mrf.mxu0
    %v363 = vadd.f32 0.0, %v362
    %v364 = vpop.f32.mrf.mxu0
    %v365 = vpop.f32.mrf.mxu0
    %v366 = vadd.f32 0.0, %v365
    %v367 = vpop.f32.mrf.mxu0
    %368 = vmatprep.mubr.bf16.mxu0 0
    %369 = vmatmul.mubr.bf16.gmra.mxu0 %v223
    %v370 = vpop.f32.mrf.mxu0
    %v371 = vadd.f32 0.0, %v370
    %v372 = vpop.f32.mrf.mxu0
    %v373 = vpop.f32.mrf.mxu0
    %v374 = vadd.f32 0.0, %v373
    %v375 = vpop.f32.mrf.mxu0
    %376 = vdwg.mxu0
    %v377 = vadd.f32 %v152, %v315
    %v378 = vadd.f32 %v153, %v318
    %v379 = vadd.f32 %v154, %v323
    %v380 = vadd.f32 %v155, %v326
    %v381 = vadd.f32 %v156, %v331
    %v382 = vadd.f32 %v157, %v334
    %v383 = vadd.f32 %v158, %v339
    %v384 = vadd.f32 %v159, %v342
    %v385 = vadd.f32 %v160, %v347
    %v386 = vadd.f32 %v161, %v350
    %v387 = vadd.f32 %v162, %v355
    %v388 = vadd.f32 %v163, %v358
    %v389 = vadd.f32 %v164, %v363
    %v390 = vadd.f32 %v165, %v366
    %v391 = vadd.f32 %v166, %v371
    %v392 = vadd.f32 %v167, %v374
    %393 = vst [vmem:[#allocation2] sm:$0xff] %v377
    %394 = vst [vmem:[#allocation2 + $0x8] sm:$0xff] %v378
    %395 = vst [vmem:[#allocation2 + $0x10] sm:$0xff] %v379
    %396 = vst [vmem:[#allocation2 + $0x18] sm:$0xff] %v380
    %397 = vst [vmem:[#allocation2 + $0x20] sm:$0xff] %v381
    %398 = vst [vmem:[#allocation2 + $0x28] sm:$0xff] %v382
    %399 = vst [vmem:[#allocation2 + $0x30] sm:$0xff] %v383
    %400 = vst [vmem:[#allocation2 + $0x38] sm:$0xff] %v384
    %401 = vst [vmem:[#allocation2 + $0x40] sm:$0xff] %v385
    %402 = vst [vmem:[#allocation2 + $0x48] sm:$0xff] %v386
    %403 = vst [vmem:[#allocation2 + $0x50] sm:$0xff] %v387
    %404 = vst [vmem:[#allocation2 + $0x58] sm:$0xff] %v388
    %405 = vst [vmem:[#allocation2 + $0x60] sm:$0xff] %v389
    %406 = vst [vmem:[#allocation2 + $0x68] sm:$0xff] %v390
    %407 = vst [vmem:[#allocation2 + $0x70] sm:$0xff] %v391
    %408 = vst [vmem:[#allocation2 + $0x78] sm:$0xff] %v392
    %v409 = vld [vmem:[#allocation3] sm:$0xff]
    %v410 = vld [vmem:[#allocation3 + $0x8] sm:$0xff]
    %v411 = vld [vmem:[#allocation3 + $0x10] sm:$0xff]
    %v412 = vld [vmem:[#allocation3 + $0x18] sm:$0xff]
    %v413 = vld [vmem:[#allocation3 + $0x20] sm:$0xff]
    %v414 = vld [vmem:[#allocation3 + $0x28] sm:$0xff]
    %v415 = vld [vmem:[#allocation3 + $0x30] sm:$0xff]
    %v416 = vld [vmem:[#allocation3 + $0x38] sm:$0xff]
    %v417 = vld [vmem:[#allocation3 + $0x40] sm:$0xff]
    %v418 = vld [vmem:[#allocation3 + $0x48] sm:$0xff]
    %v419 = vld [vmem:[#allocation3 + $0x50] sm:$0xff]
    %v420 = vld [vmem:[#allocation3 + $0x58] sm:$0xff]
    %v421 = vld [vmem:[#allocation3 + $0x60] sm:$0xff]
    %v422 = vld [vmem:[#allocation3 + $0x68] sm:$0xff]
    %v423 = vld [vmem:[#allocation3 + $0x70] sm:$0xff]
    %v424 = vld [vmem:[#allocation3 + $0x78] sm:$0xff]
    %v425 = vunpack.c.l.bf16 %v136
    %v426 = vunpack.c.l.bf16 %v137
    %v427 = vunpack.c.l.bf16 %v138
    %v428 = vunpack.c.l.bf16 %v139
    %v429 = vunpack.c.l.bf16 %v140
    %v430 = vunpack.c.l.bf16 %v141
    %v431 = vunpack.c.l.bf16 %v142
    %v432 = vunpack.c.l.bf16 %v143
    %v433 = vunpack.c.l.bf16 %v144
    %v434 = vunpack.c.l.bf16 %v145
    %v435 = vunpack.c.l.bf16 %v146
    %v436 = vunpack.c.l.bf16 %v147
    %v437 = vunpack.c.l.bf16 %v148
    %v438 = vunpack.c.l.bf16 %v149
    %v439 = vunpack.c.l.bf16 %v150
    %v440 = vunpack.c.l.bf16 %v151
    %441 = vadd.xlane.f32.xlu0 %v425
    %v442 = vpop.xlane.xlu0 %441
    %443 = vadd.xlane.f32.xlu0 %v426
    %v444 = vpop.xlane.xlu0 %443
    %445 = vadd.xlane.f32.xlu0 %v427
    %v446 = vpop.xlane.xlu0 %445
    %447 = vadd.xlane.f32.xlu0 %v428
    %v448 = vpop.xlane.xlu0 %447
    %449 = vadd.xlane.f32.xlu0 %v429
    %v450 = vpop.xlane.xlu0 %449
    %451 = vadd.xlane.f32.xlu0 %v430
    %v452 = vpop.xlane.xlu0 %451
    %453 = vadd.xlane.f32.xlu0 %v431
    %v454 = vpop.xlane.xlu0 %453
    %455 = vadd.xlane.f32.xlu0 %v432
    %v456 = vpop.xlane.xlu0 %455
    %457 = vadd.xlane.f32.xlu0 %v433
    %v458 = vpop.xlane.xlu0 %457
    %459 = vadd.xlane.f32.xlu0 %v434
    %v460 = vpop.xlane.xlu0 %459
    %461 = vadd.xlane.f32.xlu0 %v435
    %v462 = vpop.xlane.xlu0 %461
    %463 = vadd.xlane.f32.xlu0 %v436
    %v464 = vpop.xlane.xlu0 %463
    %465 = vadd.xlane.f32.xlu0 %v437
    %v466 = vpop.xlane.xlu0 %465
    %467 = vadd.xlane.f32.xlu0 %v438
    %v468 = vpop.xlane.xlu0 %467
    %469 = vadd.xlane.f32.xlu0 %v439
    %v470 = vpop.xlane.xlu0 %469
    %471 = vadd.xlane.f32.xlu0 %v440
    %v472 = vpop.xlane.xlu0 %471
    %v473 = vadd.f32 %v409, %v442
    %v474 = vadd.f32 %v410, %v444
    %v475 = vadd.f32 %v411, %v446
    %v476 = vadd.f32 %v412, %v448
    %v477 = vadd.f32 %v413, %v450
    %v478 = vadd.f32 %v414, %v452
    %v479 = vadd.f32 %v415, %v454
    %v480 = vadd.f32 %v416, %v456
    %v481 = vadd.f32 %v417, %v458
    %v482 = vadd.f32 %v418, %v460
    %v483 = vadd.f32 %v419, %v462
    %v484 = vadd.f32 %v420, %v464
    %v485 = vadd.f32 %v421, %v466
    %v486 = vadd.f32 %v422, %v468
    %v487 = vadd.f32 %v423, %v470
    %v488 = vadd.f32 %v424, %v472
    %vm489 = vcmask 7168
    %490 = vst.msk [vmem:[#allocation3] sm:$0xff] %vm489, %v473
    %491 = vst.msk [vmem:[#allocation3 + $0x8] sm:$0xff] %vm489, %v474
    %492 = vst.msk [vmem:[#allocation3 + $0x10] sm:$0xff] %vm489, %v475
    %493 = vst.msk [vmem:[#allocation3 + $0x18] sm:$0xff] %vm489, %v476
    %494 = vst.msk [vmem:[#allocation3 + $0x20] sm:$0xff] %vm489, %v477
    %495 = vst.msk [vmem:[#allocation3 + $0x28] sm:$0xff] %vm489, %v478
    %496 = vst.msk [vmem:[#allocation3 + $0x30] sm:$0xff] %vm489, %v479
    %497 = vst.msk [vmem:[#allocation3 + $0x38] sm:$0xff] %vm489, %v480
    %498 = vst.msk [vmem:[#allocation3 + $0x40] sm:$0xff] %vm489, %v481
    %499 = vst.msk [vmem:[#allocation3 + $0x48] sm:$0xff] %vm489, %v482
    %500 = vst.msk [vmem:[#allocation3 + $0x50] sm:$0xff] %vm489, %v483
    %501 = vst.msk [vmem:[#allocation3 + $0x58] sm:$0xff] %vm489, %v484
    %502 = vst.msk [vmem:[#allocation3 + $0x60] sm:$0xff] %vm489, %v485
    %503 = vst.msk [vmem:[#allocation3 + $0x68] sm:$0xff] %vm489, %v486
    %504 = vst.msk [vmem:[#allocation3 + $0x70] sm:$0xff] %vm489, %v487
    %505 = vst.msk [vmem:[#allocation3 + $0x78] sm:$0xff] %vm489, %v488
    // Predicated region
    $region58: #{tpu_custom_call.1} parent=1 // pred_check
      %p506 = pneg %p99
    $region59: #{tpu_custom_call.1} parent=1 // pred_check_branch
      %508 = sbr.rel (%p506) target = $region61
    $region60: #{tpu_custom_call.1} parent=1 // pred_region
      %v509 = vld [vmem:[#allocation2] sm:$0xff]
      %v510 = vld [vmem:[#allocation2 + $0x8] sm:$0xff]
      %v511 = vld [vmem:[#allocation2 + $0x10] sm:$0xff]
      %v512 = vld [vmem:[#allocation2 + $0x18] sm:$0xff]
      %v513 = vld [vmem:[#allocation2 + $0x20] sm:$0xff]
      %v514 = vld [vmem:[#allocation2 + $0x28] sm:$0xff]
      %v515 = vld [vmem:[#allocation2 + $0x30] sm:$0xff]
      %v516 = vld [vmem:[#allocation2 + $0x38] sm:$0xff]
      %v517 = vld [vmem:[#allocation2 + $0x40] sm:$0xff]
      %v518 = vld [vmem:[#allocation2 + $0x48] sm:$0xff]
      %v519 = vld [vmem:[#allocation2 + $0x50] sm:$0xff]
      %v520 = vld [vmem:[#allocation2 + $0x58] sm:$0xff]
      %v521 = vld [vmem:[#allocation2 + $0x60] sm:$0xff]
      %v522 = vld [vmem:[#allocation2 + $0x68] sm:$0xff]
      %v523 = vld [vmem:[#allocation2 + $0x70] sm:$0xff]
      %v524 = vld [vmem:[#allocation2 + $0x78] sm:$0xff]
      %v525 = vld [vmem:[#allocation3] sm:$0xff]
      %v526 = vld [vmem:[#allocation3 + $0x8] sm:$0xff]
      %v527 = vld [vmem:[#allocation3 + $0x10] sm:$0xff]
      %v528 = vld [vmem:[#allocation3 + $0x18] sm:$0xff]
      %v529 = vld [vmem:[#allocation3 + $0x20] sm:$0xff]
      %v530 = vld [vmem:[#allocation3 + $0x28] sm:$0xff]
      %v531 = vld [vmem:[#allocation3 + $0x30] sm:$0xff]
      %v532 = vld [vmem:[#allocation3 + $0x38] sm:$0xff]
      %v533 = vld [vmem:[#allocation3 + $0x40] sm:$0xff]
      %v534 = vld [vmem:[#allocation3 + $0x48] sm:$0xff]
      %v535 = vld [vmem:[#allocation3 + $0x50] sm:$0xff]
      %v536 = vld [vmem:[#allocation3 + $0x58] sm:$0xff]
      %v537 = vld [vmem:[#allocation3 + $0x60] sm:$0xff]
      %v538 = vld [vmem:[#allocation3 + $0x68] sm:$0xff]
      %v539 = vld [vmem:[#allocation3 + $0x70] sm:$0xff]
      %v540 = vld [vmem:[#allocation3 + $0x78] sm:$0xff]
      %v541 = vmax.f32 %v525, 1.0
      %v542 = vmax.f32 %v526, 1.0
      %v543 = vmax.f32 %v527, 1.0
      %v544 = vmax.f32 %v528, 1.0
      %v545 = vmax.f32 %v529, 1.0
      %v546 = vmax.f32 %v530, 1.0
      %v547 = vmax.f32 %v531, 1.0
      %v548 = vmax.f32 %v532, 1.0
      %v549 = vmax.f32 %v533, 1.0
      %v550 = vmax.f32 %v534, 1.0
      %v551 = vmax.f32 %v535, 1.0
      %v552 = vmax.f32 %v536, 1.0
      %v553 = vmax.f32 %v537, 1.0
      %v554 = vmax.f32 %v538, 1.0
      %v555 = vmax.f32 %v539, 1.0
      %v556 = vmax.f32 %v540, 1.0
      %v557 = vrcp.pop %v541
      %v558 = vmul.f32 1.0, %v557
      %v559 = vrcp.pop %v542
      %v560 = vmul.f32 1.0, %v559
      %v561 = vrcp.pop %v543
      %v562 = vmul.f32 1.0, %v561
      %v563 = vrcp.pop %v544
      %v564 = vmul.f32 1.0, %v563
      %v565 = vrcp.pop %v545
      %v566 = vmul.f32 1.0, %v565
      %v567 = vrcp.pop %v546
      %v568 = vmul.f32 1.0, %v567
      %v569 = vrcp.pop %v547
      %v570 = vmul.f32 1.0, %v569
      %v571 = vrcp.pop %v548
      %v572 = vmul.f32 1.0, %v571
      %v573 = vrcp.pop %v549
      %v574 = vmul.f32 1.0, %v573
      %v575 = vrcp.pop %v550
      %v576 = vmul.f32 1.0, %v575
      %v577 = vrcp.pop %v551
      %v578 = vmul.f32 1.0, %v577
      %v579 = vrcp.pop %v552
      %v580 = vmul.f32 1.0, %v579
      %v581 = vrcp.pop %v553
      %v582 = vmul.f32 1.0, %v581
      %v583 = vrcp.pop %v554
      %v584 = vmul.f32 1.0, %v583
      %v585 = vrcp.pop %v555
      %v586 = vmul.f32 1.0, %v585
      %v587 = vrcp.pop %v556
      %v588 = vmul.f32 1.0, %v587
      %590 = vset.pattern.permute.xlu0 0
      %591 = vperm.xlu0 %590, %v558
      %v592 = vpop.permute.xlu0 %591
      %595 = vset.pattern.permute.xlu0 0
      %596 = vperm.xlu0 %595, %v560
      %v597 = vpop.permute.xlu0 %596
      %600 = vset.pattern.permute.xlu0 0
      %601 = vperm.xlu0 %600, %v562
      %v602 = vpop.permute.xlu0 %601
      %605 = vset.pattern.permute.xlu0 0
      %606 = vperm.xlu0 %605, %v564
      %v607 = vpop.permute.xlu0 %606
      %610 = vset.pattern.permute.xlu0 0
      %611 = vperm.xlu0 %610, %v566
      %v612 = vpop.permute.xlu0 %611
      %615 = vset.pattern.permute.xlu0 0
      %616 = vperm.xlu0 %615, %v568
      %v617 = vpop.permute.xlu0 %616
      %620 = vset.pattern.permute.xlu0 0
      %621 = vperm.xlu0 %620, %v570
      %v622 = vpop.permute.xlu0 %621
      %625 = vset.pattern.permute.xlu0 0
      %626 = vperm.xlu0 %625, %v572
      %v627 = vpop.permute.xlu0 %626
      %630 = vset.pattern.permute.xlu0 0
      %631 = vperm.xlu0 %630, %v574
      %v632 = vpop.permute.xlu0 %631
      %635 = vset.pattern.permute.xlu0 0
      %636 = vperm.xlu0 %635, %v576
      %v637 = vpop.permute.xlu0 %636
      %640 = vset.pattern.permute.xlu0 0
      %641 = vperm.xlu0 %640, %v578
      %v642 = vpop.permute.xlu0 %641
      %645 = vset.pattern.permute.xlu0 0
      %646 = vperm.xlu0 %645, %v580
      %v647 = vpop.permute.xlu0 %646
      %650 = vset.pattern.permute.xlu0 0
      %651 = vperm.xlu0 %650, %v582
      %v652 = vpop.permute.xlu0 %651
      %655 = vset.pattern.permute.xlu0 0
      %656 = vperm.xlu0 %655, %v584
      %v657 = vpop.permute.xlu0 %656
      %660 = vset.pattern.permute.xlu0 0
      %661 = vperm.xlu0 %660, %v586
      %v662 = vpop.permute.xlu0 %661
      %665 = vset.pattern.permute.xlu0 0
      %666 = vperm.xlu0 %665, %v588
      %v667 = vpop.permute.xlu0 %666
      %v669 = vmul.f32 %v509, %v592
      %v670 = vmul.f32 %v510, %v597
      %v671 = vmul.f32 %v511, %v602
      %v672 = vmul.f32 %v512, %v607
      %v673 = vmul.f32 %v513, %v612
      %v674 = vmul.f32 %v514, %v617
      %v675 = vmul.f32 %v515, %v622
      %v676 = vmul.f32 %v516, %v627
      %v677 = vmul.f32 %v517, %v632
      %v678 = vmul.f32 %v518, %v637
      %v679 = vmul.f32 %v519, %v642
      %v680 = vmul.f32 %v520, %v647
      %v681 = vmul.f32 %v521, %v652
      %v682 = vmul.f32 %v522, %v657
      %v683 = vmul.f32 %v523, %v662
      %v684 = vmul.f32 %v524, %v667
      %v685 = vld [vmem:[#allocation9] sm:$0xf]
      %v686 = vld [vmem:[#allocation9 + $0x4] sm:$0xf]
      %v687 = vld [vmem:[#allocation9 + $0x8] sm:$0xf]
      %v688 = vld [vmem:[#allocation9 + $0xc] sm:$0xf]
      %v689 = vld [vmem:[#allocation9 + $0x10] sm:$0xf]
      %v690 = vld [vmem:[#allocation9 + $0x14] sm:$0xf]
      %v691 = vld [vmem:[#allocation9 + $0x18] sm:$0xf]
      %v692 = vld [vmem:[#allocation9 + $0x1c] sm:$0xf]
      %v693 = vld [vmem:[#allocation9 + $0x20] sm:$0xf]
      %v694 = vld [vmem:[#allocation9 + $0x24] sm:$0xf]
      %v695 = vld [vmem:[#allocation9 + $0x28] sm:$0xf]
      %v696 = vld [vmem:[#allocation9 + $0x2c] sm:$0xf]
      %v697 = vld [vmem:[#allocation9 + $0x30] sm:$0xf]
      %v698 = vld [vmem:[#allocation9 + $0x34] sm:$0xf]
      %v699 = vld [vmem:[#allocation9 + $0x38] sm:$0xf]
      %v700 = vld [vmem:[#allocation9 + $0x3c] sm:$0xf]
      %v701 = vunpack.c.l.bf16 %v685
      %v702 = vunpack.c.l.bf16 %v686
      %v703 = vunpack.c.l.bf16 %v687
      %v704 = vunpack.c.l.bf16 %v688
      %v705 = vunpack.c.l.bf16 %v689
      %v706 = vunpack.c.l.bf16 %v690
      %v707 = vunpack.c.l.bf16 %v691
      %v708 = vunpack.c.l.bf16 %v692
      %v709 = vunpack.c.l.bf16 %v693
      %v710 = vunpack.c.l.bf16 %v694
      %v711 = vunpack.c.l.bf16 %v695
      %v712 = vunpack.c.l.bf16 %v696
      %v713 = vunpack.c.l.bf16 %v697
      %v714 = vunpack.c.l.bf16 %v698
      %v715 = vunpack.c.l.bf16 %v699
      %v716 = vunpack.c.l.bf16 %v700
      %v717 = vld [vmem:[#allocation10] sm:$0xff]
      %v718 = vld [vmem:[#allocation10 + $0x8] sm:$0xff]
      %v719 = vld [vmem:[#allocation10 + $0x10] sm:$0xff]
      %v720 = vld [vmem:[#allocation10 + $0x18] sm:$0xff]
      %v721 = vld [vmem:[#allocation10 + $0x20] sm:$0xff]
      %v722 = vld [vmem:[#allocation10 + $0x28] sm:$0xff]
      %v723 = vld [vmem:[#allocation10 + $0x30] sm:$0xff]
      %v724 = vld [vmem:[#allocation10 + $0x38] sm:$0xff]
      %v725 = vld [vmem:[#allocation10 + $0x40] sm:$0xff]
      %v726 = vld [vmem:[#allocation10 + $0x48] sm:$0xff]
      %v727 = vld [vmem:[#allocation10 + $0x50] sm:$0xff]
      %v728 = vld [vmem:[#allocation10 + $0x58] sm:$0xff]
      %v729 = vld [vmem:[#allocation10 + $0x60] sm:$0xff]
      %v730 = vld [vmem:[#allocation10 + $0x68] sm:$0xff]
      %v731 = vld [vmem:[#allocation10 + $0x70] sm:$0xff]
      %v732 = vld [vmem:[#allocation10 + $0x78] sm:$0xff]
      %v733 = vld [vmem:[#allocation12] sm:$0xff]
      %v734 = vld [vmem:[#allocation12 + $0x8] sm:$0xff]
      %v735 = vld [vmem:[#allocation12 + $0x10] sm:$0xff]
      %v736 = vld [vmem:[#allocation12 + $0x18] sm:$0xff]
      %v737 = vld [vmem:[#allocation12 + $0x20] sm:$0xff]
      %v738 = vld [vmem:[#allocation12 + $0x28] sm:$0xff]
      %v739 = vld [vmem:[#allocation12 + $0x30] sm:$0xff]
      %v740 = vld [vmem:[#allocation12 + $0x38] sm:$0xff]
      %v741 = vld [vmem:[#allocation12 + $0x40] sm:$0xff]
      %v742 = vld [vmem:[#allocation12 + $0x48] sm:$0xff]
      %v743 = vld [vmem:[#allocation12 + $0x50] sm:$0xff]
      %v744 = vld [vmem:[#allocation12 + $0x58] sm:$0xff]
      %v745 = vld [vmem:[#allocation12 + $0x60] sm:$0xff]
      %v746 = vld [vmem:[#allocation12 + $0x68] sm:$0xff]
      %v747 = vld [vmem:[#allocation12 + $0x70] sm:$0xff]
      %v748 = vld [vmem:[#allocation12 + $0x78] sm:$0xff]
      %749 = vmatprep.subr.mxu0 0.0
      %750 = vmatpush1.msra.mxu0 %v748
      %751 = vmatprep.subr.mxu0 0.0
      %752 = vmatpush1.msra.mxu0 %v747
      %753 = vmatprep.subr.mxu0 0.0
      %754 = vmatpush1.msra.mxu0 %v746
      %755 = vmatprep.subr.mxu0 0.0
      %756 = vmatpush1.msra.mxu0 %v745
      %757 = vmatprep.subr.mxu0 0.0
      %758 = vmatpush1.msra.mxu0 %v744
      %759 = vmatprep.subr.mxu0 0.0
      %760 = vmatpush1.msra.mxu0 %v743
      %761 = vmatprep.subr.mxu0 0.0
      %762 = vmatpush1.msra.mxu0 %v742
      %763 = vmatprep.subr.mxu0 0.0
      %764 = vmatpush1.msra.mxu0 %v741
      %765 = vmatprep.subr.mxu0 0.0
      %766 = vmatpush1.msra.mxu0 %v740
      %767 = vmatprep.subr.mxu0 0.0
      %768 = vmatpush1.msra.mxu0 %v739
      %769 = vmatprep.subr.mxu0 0.0
      %770 = vmatpush1.msra.mxu0 %v738
      %771 = vmatprep.subr.mxu0 0.0
      %772 = vmatpush1.msra.mxu0 %v737
      %773 = vmatprep.subr.mxu0 0.0
      %774 = vmatpush1.msra.mxu0 %v736
      %775 = vmatprep.subr.mxu0 0.0
      %776 = vmatpush1.msra.mxu0 %v735
      %777 = vmatprep.subr.mxu0 0.0
      %778 = vmatpush1.msra.mxu0 %v734
      %779 = vmatprep.subr.mxu0 0.0
      %780 = vmatpush1.msra.mxu0 %v733
      %781 = vmatprep.subr.mxu0 0.0
      %782 = vmatpush2.msra.mxu0 0.0
      %783 = vmatprep.subr.mxu0 0.0
      %784 = vmatpush2.msra.mxu0 0.0
      %785 = vmatprep.subr.mxu0 0.0
      %786 = vmatpush2.msra.mxu0 0.0
      %787 = vmatprep.subr.mxu0 0.0
      %788 = vmatpush2.msra.mxu0 0.0
      %789 = vmatprep.subr.mxu0 0.0
      %790 = vmatpush2.msra.mxu0 0.0
      %791 = vmatprep.subr.mxu0 0.0
      %792 = vmatpush2.msra.mxu0 0.0
      %793 = vmatprep.subr.mxu0 0.0
      %794 = vmatpush2.msra.mxu0 0.0
      %795 = vmatprep.subr.mxu0 0.0
      %796 = vmatpush2.msra.mxu0 0.0
      %797 = vmatprep.subr.mxu0 0.0
      %798 = vmatpush2.msra.mxu0 0.0
      %799 = vmatprep.subr.mxu0 0.0
      %800 = vmatpush2.msra.mxu0 0.0
      %801 = vmatprep.subr.mxu0 0.0
      %802 = vmatpush2.msra.mxu0 0.0
      %803 = vmatprep.subr.mxu0 0.0
      %804 = vmatpush2.msra.mxu0 0.0
      %805 = vmatprep.subr.mxu0 0.0
      %806 = vmatpush2.msra.mxu0 0.0
      %807 = vmatprep.subr.mxu0 0.0
      %808 = vmatpush2.msra.mxu0 0.0
      %809 = vmatprep.subr.mxu0 0.0
      %810 = vmatpush2.msra.mxu0 0.0
      %811 = vmatprep.subr.mxu0 0.0
      %812 = vmatpush2.msra.mxu0 0.0
      %813 = vmatprep.mubr.f32.mxu0 0.0
      %814 = vmatmul.mubr.f32.gmra.mxu0 %v669
      %v815 = vpop.f32.mrf.mxu0
      %v816 = vadd.f32 0.0, %v815
      %v817 = vpop.f32.mrf.mxu0
      %818 = vmatprep.mubr.f32.mxu0 0.0
      %819 = vmatmul.mubr.f32.gmra.mxu0 %v670
      %v820 = vpop.f32.mrf.mxu0
      %v821 = vadd.f32 0.0, %v820
      %v822 = vpop.f32.mrf.mxu0
      %823 = vmatprep.mubr.f32.mxu0 0.0
      %824 = vmatmul.mubr.f32.gmra.mxu0 %v671
      %v825 = vpop.f32.mrf.mxu0
      %v826 = vadd.f32 0.0, %v825
      %v827 = vpop.f32.mrf.mxu0
      %828 = vmatprep.mubr.f32.mxu0 0.0
      %829 = vmatmul.mubr.f32.gmra.mxu0 %v672
      %v830 = vpop.f32.mrf.mxu0
      %v831 = vadd.f32 0.0, %v830
      %v832 = vpop.f32.mrf.mxu0
      %833 = vmatprep.mubr.f32.mxu0 0.0
      %834 = vmatmul.mubr.f32.gmra.mxu0 %v673
      %v835 = vpop.f32.mrf.mxu0
      %v836 = vadd.f32 0.0, %v835
      %v837 = vpop.f32.mrf.mxu0
      %838 = vmatprep.mubr.f32.mxu0 0.0
      %839 = vmatmul.mubr.f32.gmra.mxu0 %v674
      %v840 = vpop.f32.mrf.mxu0
      %v841 = vadd.f32 0.0, %v840
      %v842 = vpop.f32.mrf.mxu0
      %843 = vmatprep.mubr.f32.mxu0 0.0
      %844 = vmatmul.mubr.f32.gmra.mxu0 %v675
      %v845 = vpop.f32.mrf.mxu0
      %v846 = vadd.f32 0.0, %v845
      %v847 = vpop.f32.mrf.mxu0
      %848 = vmatprep.mubr.f32.mxu0 0.0
      %849 = vmatmul.mubr.f32.gmra.mxu0 %v676
      %v850 = vpop.f32.mrf.mxu0
      %v851 = vadd.f32 0.0, %v850
      %v852 = vpop.f32.mrf.mxu0
      %853 = vmatprep.mubr.f32.mxu0 0.0
      %854 = vmatmul.mubr.f32.gmra.mxu0 %v677
      %v855 = vpop.f32.mrf.mxu0
      %v856 = vadd.f32 0.0, %v855
      %v857 = vpop.f32.mrf.mxu0
      %858 = vmatprep.mubr.f32.mxu0 0.0
      %859 = vmatmul.mubr.f32.gmra.mxu0 %v678
      %v860 = vpop.f32.mrf.mxu0
      %v861 = vadd.f32 0.0, %v860
      %v862 = vpop.f32.mrf.mxu0
      %863 = vmatprep.mubr.f32.mxu0 0.0
      %864 = vmatmul.mubr.f32.gmra.mxu0 %v679
      %v865 = vpop.f32.mrf.mxu0
      %v866 = vadd.f32 0.0, %v865
      %v867 = vpop.f32.mrf.mxu0
      %868 = vmatprep.mubr.f32.mxu0 0.0
      %869 = vmatmul.mubr.f32.gmra.mxu0 %v680
      %v870 = vpop.f32.mrf.mxu0
      %v871 = vadd.f32 0.0, %v870
      %v872 = vpop.f32.mrf.mxu0
      %873 = vmatprep.mubr.f32.mxu0 0.0
      %874 = vmatmul.mubr.f32.gmra.mxu0 %v681
      %v875 = vpop.f32.mrf.mxu0
      %v876 = vadd.f32 0.0, %v875
      %v877 = vpop.f32.mrf.mxu0
      %878 = vmatprep.mubr.f32.mxu0 0.0
      %879 = vmatmul.mubr.f32.gmra.mxu0 %v682
      %v880 = vpop.f32.mrf.mxu0
      %v881 = vadd.f32 0.0, %v880
      %v882 = vpop.f32.mrf.mxu0
      %883 = vmatprep.mubr.f32.mxu0 0.0
      %884 = vmatmul.mubr.f32.gmra.mxu0 %v683
      %v885 = vpop.f32.mrf.mxu0
      %v886 = vadd.f32 0.0, %v885
      %v887 = vpop.f32.mrf.mxu0
      %888 = vmatprep.mubr.f32.mxu0 0.0
      %889 = vmatmul.mubr.f32.gmra.mxu0 %v684
      %v890 = vpop.f32.mrf.mxu0
      %v891 = vadd.f32 0.0, %v890
      %v892 = vpop.f32.mrf.mxu0
      %893 = vdwg.mxu0
      %894 = vmatprep.subr.mxu0 0.0
      %895 = vmatpush1.msra.mxu0 %v732
      %896 = vmatprep.subr.mxu0 0.0
      %897 = vmatpush1.msra.mxu0 %v731
      %898 = vmatprep.subr.mxu0 0.0
      %899 = vmatpush1.msra.mxu0 %v730
      %900 = vmatprep.subr.mxu0 0.0
      %901 = vmatpush1.msra.mxu0 %v729
      %902 = vmatprep.subr.mxu0 0.0
      %903 = vmatpush1.msra.mxu0 %v728
      %904 = vmatprep.subr.mxu0 0.0
      %905 = vmatpush1.msra.mxu0 %v727
      %906 = vmatprep.subr.mxu0 0.0
      %907 = vmatpush1.msra.mxu0 %v726
      %908 = vmatprep.subr.mxu0 0.0
      %909 = vmatpush1.msra.mxu0 %v725
      %910 = vmatprep.subr.mxu0 0.0
      %911 = vmatpush1.msra.mxu0 %v724
      %912 = vmatprep.subr.mxu0 0.0
      %913 = vmatpush1.msra.mxu0 %v723
      %914 = vmatprep.subr.mxu0 0.0
      %915 = vmatpush1.msra.mxu0 %v722
      %916 = vmatprep.subr.mxu0 0.0
      %917 = vmatpush1.msra.mxu0 %v721
      %918 = vmatprep.subr.mxu0 0.0
      %919 = vmatpush1.msra.mxu0 %v720
      %920 = vmatprep.subr.mxu0 0.0
      %921 = vmatpush1.msra.mxu0 %v719
      %922 = vmatprep.subr.mxu0 0.0
      %923 = vmatpush1.msra.mxu0 %v718
      %924 = vmatprep.subr.mxu0 0.0
      %925 = vmatpush1.msra.mxu0 %v717
      %926 = vmatprep.subr.mxu0 0.0
      %927 = vmatpush2.msra.mxu0 0.0
      %928 = vmatprep.subr.mxu0 0.0
      %929 = vmatpush2.msra.mxu0 0.0
      %930 = vmatprep.subr.mxu0 0.0
      %931 = vmatpush2.msra.mxu0 0.0
      %932 = vmatprep.subr.mxu0 0.0
      %933 = vmatpush2.msra.mxu0 0.0
      %934 = vmatprep.subr.mxu0 0.0
      %935 = vmatpush2.msra.mxu0 0.0
      %936 = vmatprep.subr.mxu0 0.0
      %937 = vmatpush2.msra.mxu0 0.0
      %938 = vmatprep.subr.mxu0 0.0
      %939 = vmatpush2.msra.mxu0 0.0
      %940 = vmatprep.subr.mxu0 0.0
      %941 = vmatpush2.msra.mxu0 0.0
      %942 = vmatprep.subr.mxu0 0.0
      %943 = vmatpush2.msra.mxu0 0.0
      %944 = vmatprep.subr.mxu0 0.0
      %945 = vmatpush2.msra.mxu0 0.0
      %946 = vmatprep.subr.mxu0 0.0
      %947 = vmatpush2.msra.mxu0 0.0
      %948 = vmatprep.subr.mxu0 0.0
      %949 = vmatpush2.msra.mxu0 0.0
      %950 = vmatprep.subr.mxu0 0.0
      %951 = vmatpush2.msra.mxu0 0.0
      %952 = vmatprep.subr.mxu0 0.0
      %953 = vmatpush2.msra.mxu0 0.0
      %954 = vmatprep.subr.mxu0 0.0
      %955 = vmatpush2.msra.mxu0 0.0
      %956 = vmatprep.subr.mxu0 0.0
      %957 = vmatpush2.msra.mxu0 0.0
      %958 = vmatprep.mubr.f32.mxu0 0.0
      %959 = vmatmul.mubr.f32.gmra.mxu0 %v701
      %v960 = vpop.f32.mrf.mxu0
      %v961 = vadd.f32 %v816, %v960
      %v962 = vpop.f32.mrf.mxu0
      %963 = vmatprep.mubr.f32.mxu0 0.0
      %964 = vmatmul.mubr.f32.gmra.mxu0 %v702
      %v965 = vpop.f32.mrf.mxu0
      %v966 = vadd.f32 %v821, %v965
      %v967 = vpop.f32.mrf.mxu0
      %968 = vmatprep.mubr.f32.mxu0 0.0
      %969 = vmatmul.mubr.f32.gmra.mxu0 %v703
      %v970 = vpop.f32.mrf.mxu0
      %v971 = vadd.f32 %v826, %v970
      %v972 = vpop.f32.mrf.mxu0
      %973 = vmatprep.mubr.f32.mxu0 0.0
      %974 = vmatmul.mubr.f32.gmra.mxu0 %v704
      %v975 = vpop.f32.mrf.mxu0
      %v976 = vadd.f32 %v831, %v975
      %v977 = vpop.f32.mrf.mxu0
      %978 = vmatprep.mubr.f32.mxu0 0.0
      %979 = vmatmul.mubr.f32.gmra.mxu0 %v705
      %v980 = vpop.f32.mrf.mxu0
      %v981 = vadd.f32 %v836, %v980
      %v982 = vpop.f32.mrf.mxu0
      %983 = vmatprep.mubr.f32.mxu0 0.0
      %984 = vmatmul.mubr.f32.gmra.mxu0 %v706
      %v985 = vpop.f32.mrf.mxu0
      %v986 = vadd.f32 %v841, %v985
      %v987 = vpop.f32.mrf.mxu0
      %988 = vmatprep.mubr.f32.mxu0 0.0
      %989 = vmatmul.mubr.f32.gmra.mxu0 %v707
      %v990 = vpop.f32.mrf.mxu0
      %v991 = vadd.f32 %v846, %v990
      %v992 = vpop.f32.mrf.mxu0
      %993 = vmatprep.mubr.f32.mxu0 0.0
      %994 = vmatmul.mubr.f32.gmra.mxu0 %v708
      %v995 = vpop.f32.mrf.mxu0
      %v996 = vadd.f32 %v851, %v995
      %v997 = vpop.f32.mrf.mxu0
      %998 = vmatprep.mubr.f32.mxu0 0.0
      %999 = vmatmul.mubr.f32.gmra.mxu0 %v709
      %v1000 = vpop.f32.mrf.mxu0
      %v1001 = vadd.f32 %v856, %v1000
      %v1002 = vpop.f32.mrf.mxu0
      %1003 = vmatprep.mubr.f32.mxu0 0.0
      %1004 = vmatmul.mubr.f32.gmra.mxu0 %v710
      %v1005 = vpop.f32.mrf.mxu0
      %v1006 = vadd.f32 %v861, %v1005
      %v1007 = vpop.f32.mrf.mxu0
      %1008 = vmatprep.mubr.f32.mxu0 0.0
      %1009 = vmatmul.mubr.f32.gmra.mxu0 %v711
      %v1010 = vpop.f32.mrf.mxu0
      %v1011 = vadd.f32 %v866, %v1010
      %v1012 = vpop.f32.mrf.mxu0
      %1013 = vmatprep.mubr.f32.mxu0 0.0
      %1014 = vmatmul.mubr.f32.gmra.mxu0 %v712
      %v1015 = vpop.f32.mrf.mxu0
      %v1016 = vadd.f32 %v871, %v1015
      %v1017 = vpop.f32.mrf.mxu0
      %1018 = vmatprep.mubr.f32.mxu0 0.0
      %1019 = vmatmul.mubr.f32.gmra.mxu0 %v713
      %v1020 = vpop.f32.mrf.mxu0
      %v1021 = vadd.f32 %v876, %v1020
      %v1022 = vpop.f32.mrf.mxu0
      %1023 = vmatprep.mubr.f32.mxu0 0.0
      %1024 = vmatmul.mubr.f32.gmra.mxu0 %v714
      %v1025 = vpop.f32.mrf.mxu0
      %v1026 = vadd.f32 %v881, %v1025
      %v1027 = vpop.f32.mrf.mxu0
      %1028 = vmatprep.mubr.f32.mxu0 0.0
      %1029 = vmatmul.mubr.f32.gmra.mxu0 %v715
      %v1030 = vpop.f32.mrf.mxu0
      %v1031 = vadd.f32 %v886, %v1030
      %v1032 = vpop.f32.mrf.mxu0
      %1033 = vmatprep.mubr.f32.mxu0 0.0
      %1034 = vmatmul.mubr.f32.gmra.mxu0 %v716
      %v1035 = vpop.f32.mrf.mxu0
      %v1036 = vadd.f32 %v891, %v1035
      %v1037 = vpop.f32.mrf.mxu0
      %1038 = vdwg.mxu0
      %v1039 = vld [vmem:[%s5] sm:$0x1]
      %v1041 = vlaneseq
      %v1042 = vshrl.u32 %v1041, 7
      %v1043 = vsub.s32 0, %v1042
      %v1044 = vrot.slane %v1039, %v1043
      %v1046 = vadd.f32 %v961, %v1044
      %v1047 = vadd.f32 %v966, %v1044
      %v1048 = vadd.f32 %v971, %v1044
      %v1049 = vadd.f32 %v976, %v1044
      %v1050 = vadd.f32 %v981, %v1044
      %v1051 = vadd.f32 %v986, %v1044
      %v1052 = vadd.f32 %v991, %v1044
      %v1053 = vadd.f32 %v996, %v1044
      %v1054 = vadd.f32 %v1001, %v1044
      %v1055 = vadd.f32 %v1006, %v1044
      %v1056 = vadd.f32 %v1011, %v1044
      %v1057 = vadd.f32 %v1016, %v1044
      %v1058 = vadd.f32 %v1021, %v1044
      %v1059 = vadd.f32 %v1026, %v1044
      %v1060 = vadd.f32 %v1031, %v1044
      %v1061 = vadd.f32 %v1036, %v1044
      %v1062 = vmax.f32 %v1046, 0.0
      %v1063 = vmax.f32 %v1047, 0.0
      %v1064 = vmax.f32 %v1048, 0.0
      %v1065 = vmax.f32 %v1049, 0.0
      %v1066 = vmax.f32 %v1050, 0.0
      %v1067 = vmax.f32 %v1051, 0.0
      %v1068 = vmax.f32 %v1052, 0.0
      %v1069 = vmax.f32 %v1053, 0.0
      %v1070 = vmax.f32 %v1054, 0.0
      %v1071 = vmax.f32 %v1055, 0.0
      %v1072 = vmax.f32 %v1056, 0.0
      %v1073 = vmax.f32 %v1057, 0.0
      %v1074 = vmax.f32 %v1058, 0.0
      %v1075 = vmax.f32 %v1059, 0.0
      %v1076 = vmax.f32 %v1060, 0.0
      %v1077 = vmax.f32 %v1061, 0.0
      %v1078 = vlaneseq
      %v1079 = vand.u32 %v1078, 127
      %vm1080 = vcmp.lt.s32.totalorder %v1079, 32
      %v1081 = vsel %vm1080, 1, 0
      %v1082 = vcvt.s32.f32 %v1081
      %v1083 = vmul.f32 %v1062, %v1082
      %v1084 = vmul.f32 %v1063, %v1082
      %v1085 = vmul.f32 %v1064, %v1082
      %v1086 = vmul.f32 %v1065, %v1082
      %v1087 = vmul.f32 %v1066, %v1082
      %v1088 = vmul.f32 %v1067, %v1082
      %v1089 = vmul.f32 %v1068, %v1082
      %v1090 = vmul.f32 %v1069, %v1082
      %v1091 = vmul.f32 %v1070, %v1082
      %v1092 = vmul.f32 %v1071, %v1082
      %v1093 = vmul.f32 %v1072, %v1082
      %v1094 = vmul.f32 %v1073, %v1082
      %v1095 = vmul.f32 %v1074, %v1082
      %v1096 = vmul.f32 %v1075, %v1082
      %v1097 = vmul.f32 %v1076, %v1082
      %v1098 = vmul.f32 %v1077, %v1082
      %1099 = vadd.xlane.f32.xlu0 %v1083
      %v1100 = vpop.xlane.xlu0 %1099
      %1101 = vadd.xlane.f32.xlu0 %v1084
      %v1102 = vpop.xlane.xlu0 %1101
      %1103 = vadd.xlane.f32.xlu0 %v1085
      %v1104 = vpop.xlane.xlu0 %1103
      %1105 = vadd.xlane.f32.xlu0 %v1086
      %v1106 = vpop.xlane.xlu0 %1105
      %1107 = vadd.xlane.f32.xlu0 %v1087
      %v1108 = vpop.xlane.xlu0 %1107
      %1109 = vadd.xlane.f32.xlu0 %v1088
      %v1110 = vpop.xlane.xlu0 %1109
      %1111 = vadd.xlane.f32.xlu0 %v1089
      %v1112 = vpop.xlane.xlu0 %1111
      %1113 = vadd.xlane.f32.xlu0 %v1090
      %v1114 = vpop.xlane.xlu0 %1113
      %1115 = vadd.xlane.f32.xlu0 %v1091
      %v1116 = vpop.xlane.xlu0 %1115
      %1117 = vadd.xlane.f32.xlu0 %v1092
      %v1118 = vpop.xlane.xlu0 %1117
      %1119 = vadd.xlane.f32.xlu0 %v1093
      %v1120 = vpop.xlane.xlu0 %1119
      %1121 = vadd.xlane.f32.xlu0 %v1094
      %v1122 = vpop.xlane.xlu0 %1121
      %1123 = vadd.xlane.f32.xlu0 %v1095
      %v1124 = vpop.xlane.xlu0 %1123
      %1125 = vadd.xlane.f32.xlu0 %v1096
      %v1126 = vpop.xlane.xlu0 %1125
      %1127 = vadd.xlane.f32.xlu0 %v1097
      %v1128 = vpop.xlane.xlu0 %1127
      %1129 = vadd.xlane.f32.xlu0 %v1098
      %v1130 = vpop.xlane.xlu0 %1129
      %v1131 = vmul.f32 %v1100, 0.03125
      %v1132 = vmul.f32 %v1102, 0.03125
      %v1133 = vmul.f32 %v1104, 0.03125
      %v1134 = vmul.f32 %v1106, 0.03125
      %v1135 = vmul.f32 %v1108, 0.03125
      %v1136 = vmul.f32 %v1110, 0.03125
      %v1137 = vmul.f32 %v1112, 0.03125
      %v1138 = vmul.f32 %v1114, 0.03125
      %v1139 = vmul.f32 %v1116, 0.03125
      %v1140 = vmul.f32 %v1118, 0.03125
      %v1141 = vmul.f32 %v1120, 0.03125
      %v1142 = vmul.f32 %v1122, 0.03125
      %v1143 = vmul.f32 %v1124, 0.03125
      %v1144 = vmul.f32 %v1126, 0.03125
      %v1145 = vmul.f32 %v1128, 0.03125
      %v1146 = vmul.f32 %v1130, 0.03125
      %v1147 = vsub.f32 %v1062, %v1131
      %v1148 = vsub.f32 %v1063, %v1132
      %v1149 = vsub.f32 %v1064, %v1133
      %v1150 = vsub.f32 %v1065, %v1134
      %v1151 = vsub.f32 %v1066, %v1135
      %v1152 = vsub.f32 %v1067, %v1136
      %v1153 = vsub.f32 %v1068, %v1137
      %v1154 = vsub.f32 %v1069, %v1138
      %v1155 = vsub.f32 %v1070, %v1139
      %v1156 = vsub.f32 %v1071, %v1140
      %v1157 = vsub.f32 %v1072, %v1141
      %v1158 = vsub.f32 %v1073, %v1142
      %v1159 = vsub.f32 %v1074, %v1143
      %v1160 = vsub.f32 %v1075, %v1144
      %v1161 = vsub.f32 %v1076, %v1145
      %v1162 = vsub.f32 %v1077, %v1146
      %v1163 = vmul.f32 %v1147, %v1082
      %v1164 = vmul.f32 %v1148, %v1082
      %v1165 = vmul.f32 %v1149, %v1082
      %v1166 = vmul.f32 %v1150, %v1082
      %v1167 = vmul.f32 %v1151, %v1082
      %v1168 = vmul.f32 %v1152, %v1082
      %v1169 = vmul.f32 %v1153, %v1082
      %v1170 = vmul.f32 %v1154, %v1082
      %v1171 = vmul.f32 %v1155, %v1082
      %v1172 = vmul.f32 %v1156, %v1082
      %v1173 = vmul.f32 %v1157, %v1082
      %v1174 = vmul.f32 %v1158, %v1082
      %v1175 = vmul.f32 %v1159, %v1082
      %v1176 = vmul.f32 %v1160, %v1082
      %v1177 = vmul.f32 %v1161, %v1082
      %v1178 = vmul.f32 %v1162, %v1082
      %v1179 = vmul.f32 %v1163, %v1163
      %v1180 = vmul.f32 %v1164, %v1164
      %v1181 = vmul.f32 %v1165, %v1165
      %v1182 = vmul.f32 %v1166, %v1166
      %v1183 = vmul.f32 %v1167, %v1167
      %v1184 = vmul.f32 %v1168, %v1168
      %v1185 = vmul.f32 %v1169, %v1169
      %v1186 = vmul.f32 %v1170, %v1170
      %v1187 = vmul.f32 %v1171, %v1171
      %v1188 = vmul.f32 %v1172, %v1172
      %v1189 = vmul.f32 %v1173, %v1173
      %v1190 = vmul.f32 %v1174, %v1174
      %v1191 = vmul.f32 %v1175, %v1175
      %v1192 = vmul.f32 %v1176, %v1176
      %v1193 = vmul.f32 %v1177, %v1177
      %v1194 = vmul.f32 %v1178, %v1178
      %1195 = vadd.xlane.f32.xlu0 %v1179
      %v1196 = vpop.xlane.xlu0 %1195
      %1197 = vadd.xlane.f32.xlu0 %v1180
      %v1198 = vpop.xlane.xlu0 %1197
      %1199 = vadd.xlane.f32.xlu0 %v1181
      %v1200 = vpop.xlane.xlu0 %1199
      %1201 = vadd.xlane.f32.xlu0 %v1182
      %v1202 = vpop.xlane.xlu0 %1201
      %1203 = vadd.xlane.f32.xlu0 %v1183
      %v1204 = vpop.xlane.xlu0 %1203
      %1205 = vadd.xlane.f32.xlu0 %v1184
      %v1206 = vpop.xlane.xlu0 %1205
      %1207 = vadd.xlane.f32.xlu0 %v1185
      %v1208 = vpop.xlane.xlu0 %1207
      %1209 = vadd.xlane.f32.xlu0 %v1186
      %v1210 = vpop.xlane.xlu0 %1209
      %1211 = vadd.xlane.f32.xlu0 %v1187
      %v1212 = vpop.xlane.xlu0 %1211
      %1213 = vadd.xlane.f32.xlu0 %v1188
      %v1214 = vpop.xlane.xlu0 %1213
      %1215 = vadd.xlane.f32.xlu0 %v1189
      %v1216 = vpop.xlane.xlu0 %1215
      %1217 = vadd.xlane.f32.xlu0 %v1190
      %v1218 = vpop.xlane.xlu0 %1217
      %1219 = vadd.xlane.f32.xlu0 %v1191
      %v1220 = vpop.xlane.xlu0 %1219
      %1221 = vadd.xlane.f32.xlu0 %v1192
      %v1222 = vpop.xlane.xlu0 %1221
      %1223 = vadd.xlane.f32.xlu0 %v1193
      %v1224 = vpop.xlane.xlu0 %1223
      %1225 = vadd.xlane.f32.xlu0 %v1194
      %v1226 = vpop.xlane.xlu0 %1225
      %v1227 = vmul.f32 %v1196, 0.03125
      %v1228 = vmul.f32 %v1198, 0.03125
      %v1229 = vmul.f32 %v1200, 0.03125
      %v1230 = vmul.f32 %v1202, 0.03125
      %v1231 = vmul.f32 %v1204, 0.03125
      %v1232 = vmul.f32 %v1206, 0.03125
      %v1233 = vmul.f32 %v1208, 0.03125
      %v1234 = vmul.f32 %v1210, 0.03125
      %v1235 = vmul.f32 %v1212, 0.03125
      %v1236 = vmul.f32 %v1214, 0.03125
      %v1237 = vmul.f32 %v1216, 0.03125
      %v1238 = vmul.f32 %v1218, 0.03125
      %v1239 = vmul.f32 %v1220, 0.03125
      %v1240 = vmul.f32 %v1222, 0.03125
      %v1241 = vmul.f32 %v1224, 0.03125
      %v1242 = vmul.f32 %v1226, 0.03125
      %v1243 = vadd.f32 %v1227, 1e-05
      %v1244 = vadd.f32 %v1228, 1e-05
      %v1245 = vadd.f32 %v1229, 1e-05
      %v1246 = vadd.f32 %v1230, 1e-05
      %v1247 = vadd.f32 %v1231, 1e-05
      %v1248 = vadd.f32 %v1232, 1e-05
      %v1249 = vadd.f32 %v1233, 1e-05
      %v1250 = vadd.f32 %v1234, 1e-05
      %v1251 = vadd.f32 %v1235, 1e-05
      %v1252 = vadd.f32 %v1236, 1e-05
      %v1253 = vadd.f32 %v1237, 1e-05
      %v1254 = vadd.f32 %v1238, 1e-05
      %v1255 = vadd.f32 %v1239, 1e-05
      %v1256 = vadd.f32 %v1240, 1e-05
      %v1257 = vadd.f32 %v1241, 1e-05
      %v1258 = vadd.f32 %v1242, 1e-05
      %v1259 = vrsqrt.pop %v1243
      %v1260 = vrsqrt.pop %v1244
      %v1261 = vrsqrt.pop %v1245
      %v1262 = vrsqrt.pop %v1246
      %v1263 = vrsqrt.pop %v1247
      %v1264 = vrsqrt.pop %v1248
      %v1265 = vrsqrt.pop %v1249
      %v1266 = vrsqrt.pop %v1250
      %v1267 = vrsqrt.pop %v1251
      %v1268 = vrsqrt.pop %v1252
      %v1269 = vrsqrt.pop %v1253
      %v1270 = vrsqrt.pop %v1254
      %v1271 = vrsqrt.pop %v1255
      %v1272 = vrsqrt.pop %v1256
      %v1273 = vrsqrt.pop %v1257
      %v1274 = vrsqrt.pop %v1258
      %v1275 = vmul.f32 %v1147, %v1259
      %v1276 = vmul.f32 %v1148, %v1260
      %v1277 = vmul.f32 %v1149, %v1261
      %v1278 = vmul.f32 %v1150, %v1262
      %v1279 = vmul.f32 %v1151, %v1263
      %v1280 = vmul.f32 %v1152, %v1264
      %v1281 = vmul.f32 %v1153, %v1265
      %v1282 = vmul.f32 %v1154, %v1266
      %v1283 = vmul.f32 %v1155, %v1267
      %v1284 = vmul.f32 %v1156, %v1268
      %v1285 = vmul.f32 %v1157, %v1269
      %v1286 = vmul.f32 %v1158, %v1270
      %v1287 = vmul.f32 %v1159, %v1271
      %v1288 = vmul.f32 %v1160, %v1272
      %v1289 = vmul.f32 %v1161, %v1273
      %v1290 = vmul.f32 %v1162, %v1274
      %v1291 = vld [vmem:[%s6] sm:$0x1]
      %v1293 = vlaneseq
      %v1294 = vshrl.u32 %v1293, 7
      %v1295 = vsub.s32 0, %v1294
      %v1296 = vrot.slane %v1291, %v1295
      %v1298 = vmul.f32 %v1275, %v1296
      %v1299 = vmul.f32 %v1276, %v1296
      %v1300 = vmul.f32 %v1277, %v1296
      %v1301 = vmul.f32 %v1278, %v1296
      %v1302 = vmul.f32 %v1279, %v1296
      %v1303 = vmul.f32 %v1280, %v1296
      %v1304 = vmul.f32 %v1281, %v1296
      %v1305 = vmul.f32 %v1282, %v1296
      %v1306 = vmul.f32 %v1283, %v1296
      %v1307 = vmul.f32 %v1284, %v1296
      %v1308 = vmul.f32 %v1285, %v1296
      %v1309 = vmul.f32 %v1286, %v1296
      %v1310 = vmul.f32 %v1287, %v1296
      %v1311 = vmul.f32 %v1288, %v1296
      %v1312 = vmul.f32 %v1289, %v1296
      %v1313 = vmul.f32 %v1290, %v1296
      %v1314 = vld [vmem:[%s7] sm:$0x1]
      %v1316 = vlaneseq
      %v1317 = vshrl.u32 %v1316, 7
      %v1318 = vsub.s32 0, %v1317
      %v1319 = vrot.slane %v1314, %v1318
      %v1321 = vadd.f32 %v1298, %v1319
      %v1322 = vadd.f32 %v1299, %v1319
      %v1323 = vadd.f32 %v1300, %v1319
      %v1324 = vadd.f32 %v1301, %v1319
      %v1325 = vadd.f32 %v1302, %v1319
      %v1326 = vadd.f32 %v1303, %v1319
      %v1327 = vadd.f32 %v1304, %v1319
      %v1328 = vadd.f32 %v1305, %v1319
      %v1329 = vadd.f32 %v1306, %v1319
      %v1330 = vadd.f32 %v1307, %v1319
      %v1331 = vadd.f32 %v1308, %v1319
      %v1332 = vadd.f32 %v1309, %v1319
      %v1333 = vadd.f32 %v1310, %v1319
      %v1334 = vadd.f32 %v1311, %v1319
      %v1335 = vadd.f32 %v1312, %v1319
      %v1336 = vadd.f32 %v1313, %v1319
      %v1337 = vpack.c.bf16 %v1322, %v1321
      %v1338 = vpack.c.bf16 %v1324, %v1323
      %v1339 = vpack.c.bf16 %v1326, %v1325
      %v1340 = vpack.c.bf16 %v1328, %v1327
      %v1341 = vpack.c.bf16 %v1330, %v1329
      %v1342 = vpack.c.bf16 %v1332, %v1331
      %v1343 = vpack.c.bf16 %v1334, %v1333
      %v1344 = vpack.c.bf16 %v1336, %v1335
      %v1353 = vunpack.c.l.b16 %v1337
      %v1354 = vunpack.c.h.b16 %v1337
      %v1355 = vunpack.c.l.b16 %v1338
      %v1356 = vunpack.c.h.b16 %v1338
      %v1357 = vunpack.c.l.b16 %v1339
      %v1358 = vunpack.c.h.b16 %v1339
      %v1359 = vunpack.c.l.b16 %v1340
      %v1360 = vunpack.c.h.b16 %v1340
      %v1361 = vunpack.c.l.b16 %v1341
      %v1362 = vunpack.c.h.b16 %v1341
      %v1363 = vunpack.c.l.b16 %v1342
      %v1364 = vunpack.c.h.b16 %v1342
      %v1365 = vunpack.c.l.b16 %v1343
      %v1366 = vunpack.c.h.b16 %v1343
      %v1367 = vunpack.c.l.b16 %v1344
      %v1368 = vunpack.c.h.b16 %v1344
      %v1369 = vpack.c.b16 %v1353, %v1353
      %v1370 = vpack.c.b16 %v1354, %v1354
      %v1371 = vpack.c.b16 %v1355, %v1355
      %v1372 = vpack.c.b16 %v1356, %v1356
      %v1373 = vpack.c.b16 %v1357, %v1357
      %v1374 = vpack.c.b16 %v1358, %v1358
      %v1375 = vpack.c.b16 %v1359, %v1359
      %v1376 = vpack.c.b16 %v1360, %v1360
      %v1377 = vpack.c.b16 %v1361, %v1361
      %v1378 = vpack.c.b16 %v1362, %v1362
      %v1379 = vpack.c.b16 %v1363, %v1363
      %v1380 = vpack.c.b16 %v1364, %v1364
      %v1381 = vpack.c.b16 %v1365, %v1365
      %v1382 = vpack.c.b16 %v1366, %v1366
      %v1383 = vpack.c.b16 %v1367, %v1367
      %v1384 = vpack.c.b16 %v1368, %v1368
      %1401 = vst [vmem:[#allocation13] sm:$0xf] %v1369
      %1402 = vst [vmem:[#allocation13 + $0x4] sm:$0xf] %v1370
      %1403 = vst [vmem:[#allocation13 + $0x8] sm:$0xf] %v1371
      %1404 = vst [vmem:[#allocation13 + $0xc] sm:$0xf] %v1372
      %1405 = vst [vmem:[#allocation13 + $0x10] sm:$0xf] %v1373
      %1406 = vst [vmem:[#allocation13 + $0x14] sm:$0xf] %v1374
      %1407 = vst [vmem:[#allocation13 + $0x18] sm:$0xf] %v1375
      %1408 = vst [vmem:[#allocation13 + $0x1c] sm:$0xf] %v1376
      %1409 = vst [vmem:[#allocation13 + $0x20] sm:$0xf] %v1377
      %1410 = vst [vmem:[#allocation13 + $0x24] sm:$0xf] %v1378
      %1411 = vst [vmem:[#allocation13 + $0x28] sm:$0xf] %v1379
      %1412 = vst [vmem:[#allocation13 + $0x2c] sm:$0xf] %v1380
      %1413 = vst [vmem:[#allocation13 + $0x30] sm:$0xf] %v1381
      %1414 = vst [vmem:[#allocation13 + $0x34] sm:$0xf] %v1382
      %1415 = vst [vmem:[#allocation13 + $0x38] sm:$0xf] %v1383
      %1416 = vst [vmem:[#allocation13 + $0x3c] sm:$0xf] %v1384
    $region61: #{tpu_custom_call.1} parent=1 // pred_fallthru
      _
    // Predicated region
    $region62: #{tpu_custom_call.1} parent=1 // pred_check
      _
    $region63: #{tpu_custom_call.1} parent=1 // pred_check_branch
      %1418 = sbr.rel (0) target = $region65
    $region64: #{tpu_custom_call.1} parent=1 // pred_region
      %s1420 = ssub.s32 1024, 1024
      %1421 = vsyncadd [#allocation6], %s1420
      %s1422 = sshll.u32 [#allocation13], 4
      %s1423 = int_to_ptr.vmem [resolvable:$true] %s1422
      %1428 = dma.vmem_to_hbm [thread:$0]  %s1423, 1024, %s8, [#allocation6], 64, 64, 4
    $region65: #{tpu_custom_call.1} parent=1 // pred_fallthru
      _
    // Predicated region
    $region66: #{tpu_custom_call.1} parent=1 // pred_check
      _
    $region67: #{tpu_custom_call.1} parent=1 // pred_check_branch
      %1430 = sbr.rel (0) target = $region69
    $region68: #{tpu_custom_call.1} parent=1 // pred_region
      %1431 = dma.done [#allocation6], 1024
    $region69: #{tpu_custom_call.1} parent=1 // pred_fallthru
      _
    %1432 = vsyncpa [#allocation5], 1
    %1433 = vsyncpa [#allocation8], 1
    %1434 = vsyncpa [#allocation11], 1
    %1435 = vsyncpa [#allocation6], 1

</llo_original>
